<compile_context>
chip_gen: v7x
topology: tpu7x:2x2x1
jax: 0.10.0
libtpu: 0.0.40
codegen_flags: <defaults>
</compile_context>

<pallas_src>
import jax
import jax.numpy as jnp
from jax.experimental import pallas as pl
from jax.experimental.pallas import tpu as pltpu


def _round_up(x, m):
    return ((x + m - 1) // m) * m


def _mlp_kernel(x_ref, alphas_ref,
                w1, b1, w2, b2, w3, b3, w4, b4, w5, b5, w6, b6,
                out_ref):
    """Fused 6-layer MLP on one batch tile.

    Matmuls run on the MXU with (by default) bf16 operands and f32
    accumulation; PReLU is a VPU select whose scalar alpha comes from SMEM.
    """

    def linear(h, w_ref, b_ref):
        # Cast activations to the weight dtype right at the MXU boundary;
        # accumulate in f32.
        return jnp.dot(h.astype(w_ref.dtype), w_ref[...],
                       preferred_element_type=jnp.float32) + b_ref[...]

    def prelu(y, alpha):
        return jnp.where(y >= 0, y, alpha * y)

    h = x_ref[...]
    h = prelu(linear(h, w1, b1), alphas_ref[0])
    h = prelu(linear(h, w2, b2), alphas_ref[1])
    h = prelu(linear(h, w3, b3), alphas_ref[2])
    h = prelu(linear(h, w4, b4), alphas_ref[3])
    h = prelu(linear(h, w5, b5), alphas_ref[4])
    # Final Linear (lane-padded to a multiple of 128), no activation.
    # Lane-dense, unmasked store.
    out_ref[...] = linear(h, w6, b6).astype(out_ref.dtype)


def prepare_params(params, *, weights_dtype=jnp.bfloat16):
    """One-time parameter prep (call once, NOT per forward step).

    * weights cast to `weights_dtype` (bf16 default: native MXU operand dtype,
      half the resident VMEM; pass jnp.float32 for an f32-storage fallback),
    * final layer lane-padded to a multiple of 128 so output stores are
      unmasked / lane-dense,
    * the 5 scalar PReLU alphas packed into one SMEM-resident (5,) vector.
    """
    out_features = int(params["w6"].shape[1])
    n_pad = max(128, _round_up(out_features, 128))
    w = [params[f"w{i}"].astype(weights_dtype) for i in range(1, 7)]
    b = [params[f"b{i}"].reshape(1, -1).astype(jnp.float32) for i in range(1, 7)]
    w[5] = jnp.pad(w[5], ((0, 0), (0, n_pad - out_features)))
    b[5] = jnp.pad(b[5], ((0, 0), (0, n_pad - out_features)))
    # TODO(synk): only PyTorch's default single-parameter PReLU is supported;
    # per-channel PReLU (num_parameters > 1) would need per-layer VMEM vectors.
    alphas = jnp.stack(
        [params[f"a{i}"].reshape(()) for i in range(1, 6)]).astype(jnp.float32)
    return {"weights": tuple(w), "biases": tuple(b), "alphas": alphas,
            "out_features": out_features, "n_pad": n_pad}


def encode_time_series_to_spectral_matrix(x, params, *, tm=None):
    """Pallas forward of EncodeTimeSeriesToSpectralMatrix.

    x: [B, in_features] float (f32 or bf16).
    params: either raw params (w1..w6 [in,out], b1..b6 [1,out], a1..a5 [1,1])
            or the output of prepare_params().
    Returns (output [B, out_features], 0), matching the PyTorch forward.

    Precision contract: matmuls use bf16 MXU operands with f32 accumulation
    (PyTorch's f32 Linear differs by ~1e-2 relative error). Prepare the params
    with weights_dtype=jnp.float32 for an f32-storage fallback.
    """
    if "alphas" not in params:          # raw PyTorch-style params -> prep once
        params = prepare_params(params)
    w = params["weights"]
    b = params["biases"]
    alphas = params["alphas"]
    out_features = params["out_features"]
    n_pad = params["n_pad"]

    B, in_features = x.shape
    assert int(w[0].shape[0]) == in_features, "in_features mismatch"

    # ---- batch tile: big (amortize ~0.35us/step), but >= 2 grid steps so the
    # "parallel" axis can split across the two TensorCores on v7x. ----
    if tm is None:
        TM_CAP = 1024                   # sweepable; intermediates stay tiny
        if B <= 8:
            tm = B                      # can't split below one sublane tile
        else:
            tm = min(TM_CAP, _round_up(-(-B // 2), 8))
    grid = (pl.cdiv(B, tm),)

    ordered = []
    for wi, bi in zip(w, b):
        ordered += [wi, bi]

    # Grid-invariant weights/biases: whole-array VMEM residents (no
    # block_shape) -> single copy, no double-buffering.
    resident = pl.BlockSpec(memory_space=pltpu.MemorySpace.VMEM)
    in_specs = [
        pl.BlockSpec((tm, in_features), lambda i: (i, 0)),   # streamed x tile
        pl.BlockSpec(memory_space=pltpu.MemorySpace.SMEM),   # packed PReLU alphas
    ] + [resident] * len(ordered)

    # ---- VMEM budget: actual footprint + headroom, capped at 48 MiB so we
    # never ask for 100% of v7x's 64 MiB per-TC VMEM. ----
    def nbytes(a):
        return int(a.size) * a.dtype.itemsize

    widest = max(int(wi.shape[1]) for wi in w)
    vmem_need = (sum(nbytes(a) for a in ordered)             # resident params
                 + 2 * tm * in_features * x.dtype.itemsize   # double-buffered x
                 + 2 * tm * n_pad * 4                        # double-buffered out
                 + 6 * tm * widest * 4)                      # live f32 temporaries
    vmem_limit = int(min(max(2 * vmem_need, 16 << 20), 48 << 20))
    vmem_limit = int(max(vmem_limit, vmem_need + (4 << 20)))

    flops = 2 * B * sum(int(wi.shape[0]) * int(wi.shape[1]) for wi in w)
    bytes_accessed = (int(x.size) * x.dtype.itemsize
                      + sum(nbytes(a) for a in ordered)
                      + int(alphas.size) * 4
                      + B * n_pad * 4)
    cost = pl.CostEstimate(flops=flops, transcendentals=0,
                           bytes_accessed=bytes_accessed)

    out = pl.pallas_call(
        _mlp_kernel,
        out_shape=jax.ShapeDtypeStruct((B, n_pad), x.dtype),
        grid_spec=pltpu.PrefetchScalarGridSpec(
            num_scalar_prefetch=0,
            grid=grid,
            in_specs=in_specs,
            out_specs=pl.BlockSpec((tm, n_pad), lambda i: (i, 0)),
        ),
        compiler_params=pltpu.CompilerParams(
            dimension_semantics=("parallel",),
            vmem_limit_bytes=vmem_limit,
        ),
        cost_estimate=cost,
    )(x, alphas, *ordered)
    # Drop the lane padding; keep the (output, 0) PyTorch forward signature.
    # Note: if B is not a multiple of tm, the padded rows of the last x tile
    # are garbage but harmless (each output row depends only on its own input
    # row, and the padded output rows are sliced away by the (B, ...) shape).
    return out[:, :out_features], 0


def init_params(key, in_features, out_features):
    """Deterministic Xavier-uniform-style init for 6 Linear layers + 5 PReLUs."""
    base = in_features + out_features
    dims = [in_features, base * 16, base * 8, base * 4, base * 8, base * 16,
            out_features]
    params = {}
    keys = jax.random.split(key, 12)
    for li in range(6):
        fan_in, fan_out = dims[li], dims[li + 1]
        limit = jnp.sqrt(6.0 / (fan_in + fan_out))
        params[f"w{li + 1}"] = jax.random.uniform(
            keys[2 * li], (fan_in, fan_out), minval=-limit, maxval=limit,
            dtype=jnp.float32)
        params[f"b{li + 1}"] = jax.random.uniform(
            keys[2 * li + 1], (1, fan_out), minval=-limit, maxval=limit,
            dtype=jnp.float32)
    for ai in range(5):
        # PyTorch PReLU default: single shared parameter initialized to 0.25.
        params[f"a{ai + 1}"] = jnp.full((1, 1), 0.25, dtype=jnp.float32)
    return params


def _reference_forward(x, params, *, match_kernel_precision=True):
    """Pure-JAX reference.

    match_kernel_precision=True mirrors the kernel's precision contract
    (bf16 MXU operands, f32 accumulation).  False uses Precision.HIGHEST f32
    matmuls — the closest TPU analogue of PyTorch's f32 nn.Linear — for a
    non-circular sanity check at a documented looser tolerance.
    """
    h = x.astype(jnp.float32)
    for li in range(1, 7):
        w = params[f"w{li}"]
        if match_kernel_precision:
            y = jnp.dot(h.astype(jnp.bfloat16), w.astype(jnp.bfloat16),
                        preferred_element_type=jnp.float32)
        else:
            y = jnp.dot(h, w.astype(jnp.float32),
                        precision=jax.lax.Precision.HIGHEST)
        y = y + params[f"b{li}"]
        if li < 6:
            alpha = params[f"a{li}"][0, 0]
            y = jnp.where(y >= 0, y, alpha * y)
        h = y
    return h


# TODO(synk): the PyTorch fit() training loop (Adam + StepLR + MSELoss) is
# host-side training logic and is intentionally not translated; only forward()
# is kernelized.

if __name__ == "__main__":
    in_features = 8
    out_features = 8
    batch = 16   # two batch tiles of 8 -> exercises the pipelined grid and the
                 # dual-TensorCore split on v7x

    key = jax.random.PRNGKey(0)
    k_x, k_p = jax.random.split(key)
    x = jax.random.normal(k_x, (batch, in_features), dtype=jnp.float32)
    params = init_params(k_p, in_features, out_features)
    prepped = prepare_params(params)          # one-time cast / pad / pack

    out, aux = encode_time_series_to_spectral_matrix(x, prepped)
    out = jax.block_until_ready(out)

    assert out.shape == (batch, out_features)
    assert aux == 0

    # (1) Tight check at the kernel's precision contract (bf16 ops, f32 acc).
    ref_bf16 = _reference_forward(x, params, match_kernel_precision=True)
    assert jnp.allclose(out, ref_bf16, atol=1e-2, rtol=1e-2), \
        "mismatch vs bf16-matched reference"

    # (2) Non-circular sanity check vs an f32 (Precision.HIGHEST) reference;
    #     the loose tolerance documents the bf16-operand precision contract.
    ref_f32 = _reference_forward(x, params, match_kernel_precision=False)
    assert jnp.allclose(out, ref_f32, atol=1e-1, rtol=1e-1), \
        "drift vs f32 reference exceeds the documented bf16 precision contract"

    print("KERNEL_OK")
</pallas_src>

<mosaic_0001>
module attributes {stable_mosaic.version = 11 : i64} {
  func.func @_mlp_kernel(%arg0: i32, %arg1: memref<8x8xf32, #tpu.memory_space<vmem>>, %arg2: memref<5xf32, #tpu.memory_space<smem>>, %arg3: memref<8x256xbf16, #tpu.memory_space<vmem>>, %arg4: memref<1x256xf32, #tpu.memory_space<vmem>>, %arg5: memref<256x128xbf16, #tpu.memory_space<vmem>>, %arg6: memref<1x128xf32, #tpu.memory_space<vmem>>, %arg7: memref<128x64xbf16, #tpu.memory_space<vmem>>, %arg8: memref<1x64xf32, #tpu.memory_space<vmem>>, %arg9: memref<64x128xbf16, #tpu.memory_space<vmem>>, %arg10: memref<1x128xf32, #tpu.memory_space<vmem>>, %arg11: memref<128x256xbf16, #tpu.memory_space<vmem>>, %arg12: memref<1x256xf32, #tpu.memory_space<vmem>>, %arg13: memref<256x128xbf16, #tpu.memory_space<vmem>>, %arg14: memref<1x128xf32, #tpu.memory_space<vmem>>, %arg15: memref<8x128xf32, #tpu.memory_space<vmem>>) attributes {dimension_semantics = [#tpu.dimension_semantics<parallel>], iteration_bounds = array<i64: 2>, scalar_prefetch = 0 : i64, scratch_operands = 0 : i64, tpu.core_type = #tpu.core_type<tc>, window_params = [{transform_indices = @transform_0, window_bounds = array<i64: 8, 8>}, {transform_indices = @transform_1, window_bounds = array<i64: 5>}, {pipeline_mode = #tpu.pipeline_mode<synchronous>, transform_indices = @transform_2, window_bounds = array<i64: 8, 256>}, {pipeline_mode = #tpu.pipeline_mode<synchronous>, transform_indices = @transform_3, window_bounds = array<i64: 1, 256>}, {pipeline_mode = #tpu.pipeline_mode<synchronous>, transform_indices = @transform_4, window_bounds = array<i64: 256, 128>}, {pipeline_mode = #tpu.pipeline_mode<synchronous>, transform_indices = @transform_5, window_bounds = array<i64: 1, 128>}, {pipeline_mode = #tpu.pipeline_mode<synchronous>, transform_indices = @transform_6, window_bounds = array<i64: 128, 64>}, {pipeline_mode = #tpu.pipeline_mode<synchronous>, transform_indices = @transform_7, window_bounds = array<i64: 1, 64>}, {pipeline_mode = #tpu.pipeline_mode<synchronous>, transform_indices = @transform_8, window_bounds = array<i64: 64, 128>}, {pipeline_mode = #tpu.pipeline_mode<synchronous>, transform_indices = @transform_9, window_bounds = array<i64: 1, 128>}, {pipeline_mode = #tpu.pipeline_mode<synchronous>, transform_indices = @transform_10, window_bounds = array<i64: 128, 256>}, {pipeline_mode = #tpu.pipeline_mode<synchronous>, transform_indices = @transform_11, window_bounds = array<i64: 1, 256>}, {pipeline_mode = #tpu.pipeline_mode<synchronous>, transform_indices = @transform_12, window_bounds = array<i64: 256, 128>}, {pipeline_mode = #tpu.pipeline_mode<synchronous>, transform_indices = @transform_13, window_bounds = array<i64: 1, 128>}, {transform_indices = @transform_14, window_bounds = array<i64: 8, 128>}]} {
    %c0 = arith.constant 0 : index
    %c0_0 = arith.constant 0 : index
    %0 = vector.load %arg1[%c0, %c0_0] : memref<8x8xf32, #tpu.memory_space<vmem>>, vector<8x8xf32>
    %1 = arith.truncf %0 : vector<8x8xf32> to vector<8x8xbf16>
    %c0_1 = arith.constant 0 : index
    %c0_2 = arith.constant 0 : index
    %2 = vector.load %arg3[%c0_1, %c0_2] : memref<8x256xbf16, #tpu.memory_space<vmem>>, vector<8x256xbf16>
    %cst = arith.constant dense<0.000000e+00> : vector<8x256xf32>
    %3 = tpu.matmul %1, %2, %cst {dimension_numbers = #tpu.dot_dimension_numbers<[1], [0], [0], [1], [0, 0, 1, 1], [], []>} : vector<8x8xbf16>, vector<8x256xbf16>, vector<8x256xf32> -> vector<8x256xf32>
    %c0_3 = arith.constant 0 : index
    %c0_4 = arith.constant 0 : index
    %4 = vector.load %arg4[%c0_3, %c0_4] : memref<1x256xf32, #tpu.memory_space<vmem>>, vector<1x256xf32>
    %5 = vector.broadcast %4 : vector<1x256xf32> to vector<8x256xf32>
    %6 = arith.addf %3, %5 : vector<8x256xf32>
    %c0_5 = arith.constant 0 : index
    %7 = memref.load %arg2[%c0_5] : memref<5xf32, #tpu.memory_space<smem>>
    %cst_6 = arith.constant 0.000000e+00 : f32
    %8 = vector.broadcast %cst_6 : f32 to vector<8x256xf32>
    %9 = arith.cmpf oge, %6, %8 : vector<8x256xf32>
    %10 = vector.broadcast %7 : f32 to vector<8x256xf32>
    %11 = arith.mulf %10, %6 : vector<8x256xf32>
    %12 = arith.select %9, %6, %11 : vector<8x256xi1>, vector<8x256xf32>
    %13 = arith.truncf %12 : vector<8x256xf32> to vector<8x256xbf16>
    %c0_7 = arith.constant 0 : index
    %c0_8 = arith.constant 0 : index
    %14 = vector.load %arg5[%c0_7, %c0_8] : memref<256x128xbf16, #tpu.memory_space<vmem>>, vector<256x128xbf16>
    %cst_9 = arith.constant dense<0.000000e+00> : vector<8x128xf32>
    %15 = tpu.matmul %13, %14, %cst_9 {dimension_numbers = #tpu.dot_dimension_numbers<[1], [0], [0], [1], [0, 0, 1, 1], [], []>} : vector<8x256xbf16>, vector<256x128xbf16>, vector<8x128xf32> -> vector<8x128xf32>
    %c0_10 = arith.constant 0 : index
    %c0_11 = arith.constant 0 : index
    %16 = vector.load %arg6[%c0_10, %c0_11] : memref<1x128xf32, #tpu.memory_space<vmem>>, vector<1x128xf32>
    %17 = vector.broadcast %16 : vector<1x128xf32> to vector<8x128xf32>
    %18 = arith.addf %15, %17 : vector<8x128xf32>
    %c1 = arith.constant 1 : index
    %19 = memref.load %arg2[%c1] : memref<5xf32, #tpu.memory_space<smem>>
    %cst_12 = arith.constant 0.000000e+00 : f32
    %20 = vector.broadcast %cst_12 : f32 to vector<8x128xf32>
    %21 = arith.cmpf oge, %18, %20 : vector<8x128xf32>
    %22 = vector.broadcast %19 : f32 to vector<8x128xf32>
    %23 = arith.mulf %22, %18 : vector<8x128xf32>
    %24 = arith.select %21, %18, %23 : vector<8x128xi1>, vector<8x128xf32>
    %25 = arith.truncf %24 : vector<8x128xf32> to vector<8x128xbf16>
    %c0_13 = arith.constant 0 : index
    %c0_14 = arith.constant 0 : index
    %26 = vector.load %arg7[%c0_13, %c0_14] : memref<128x64xbf16, #tpu.memory_space<vmem>>, vector<128x64xbf16>
    %cst_15 = arith.constant dense<0.000000e+00> : vector<8x64xf32>
    %27 = tpu.matmul %25, %26, %cst_15 {dimension_numbers = #tpu.dot_dimension_numbers<[1], [0], [0], [1], [0, 0, 1, 1], [], []>} : vector<8x128xbf16>, vector<128x64xbf16>, vector<8x64xf32> -> vector<8x64xf32>
    %c0_16 = arith.constant 0 : index
    %c0_17 = arith.constant 0 : index
    %28 = vector.load %arg8[%c0_16, %c0_17] : memref<1x64xf32, #tpu.memory_space<vmem>>, vector<1x64xf32>
    %29 = vector.broadcast %28 : vector<1x64xf32> to vector<8x64xf32>
    %30 = arith.addf %27, %29 : vector<8x64xf32>
    %c2 = arith.constant 2 : index
    %31 = memref.load %arg2[%c2] : memref<5xf32, #tpu.memory_space<smem>>
    %cst_18 = arith.constant 0.000000e+00 : f32
    %32 = vector.broadcast %cst_18 : f32 to vector<8x64xf32>
    %33 = arith.cmpf oge, %30, %32 : vector<8x64xf32>
    %34 = vector.broadcast %31 : f32 to vector<8x64xf32>
    %35 = arith.mulf %34, %30 : vector<8x64xf32>
    %36 = arith.select %33, %30, %35 : vector<8x64xi1>, vector<8x64xf32>
    %37 = arith.truncf %36 : vector<8x64xf32> to vector<8x64xbf16>
    %c0_19 = arith.constant 0 : index
    %c0_20 = arith.constant 0 : index
    %38 = vector.load %arg9[%c0_19, %c0_20] : memref<64x128xbf16, #tpu.memory_space<vmem>>, vector<64x128xbf16>
    %cst_21 = arith.constant dense<0.000000e+00> : vector<8x128xf32>
    %39 = tpu.matmul %37, %38, %cst_21 {dimension_numbers = #tpu.dot_dimension_numbers<[1], [0], [0], [1], [0, 0, 1, 1], [], []>} : vector<8x64xbf16>, vector<64x128xbf16>, vector<8x128xf32> -> vector<8x128xf32>
    %c0_22 = arith.constant 0 : index
    %c0_23 = arith.constant 0 : index
    %40 = vector.load %arg10[%c0_22, %c0_23] : memref<1x128xf32, #tpu.memory_space<vmem>>, vector<1x128xf32>
    %41 = vector.broadcast %40 : vector<1x128xf32> to vector<8x128xf32>
    %42 = arith.addf %39, %41 : vector<8x128xf32>
    %c3 = arith.constant 3 : index
    %43 = memref.load %arg2[%c3] : memref<5xf32, #tpu.memory_space<smem>>
    %cst_24 = arith.constant 0.000000e+00 : f32
    %44 = vector.broadcast %cst_24 : f32 to vector<8x128xf32>
    %45 = arith.cmpf oge, %42, %44 : vector<8x128xf32>
    %46 = vector.broadcast %43 : f32 to vector<8x128xf32>
    %47 = arith.mulf %46, %42 : vector<8x128xf32>
    %48 = arith.select %45, %42, %47 : vector<8x128xi1>, vector<8x128xf32>
    %49 = arith.truncf %48 : vector<8x128xf32> to vector<8x128xbf16>
    %c0_25 = arith.constant 0 : index
    %c0_26 = arith.constant 0 : index
    %50 = vector.load %arg11[%c0_25, %c0_26] : memref<128x256xbf16, #tpu.memory_space<vmem>>, vector<128x256xbf16>
    %cst_27 = arith.constant dense<0.000000e+00> : vector<8x256xf32>
    %51 = tpu.matmul %49, %50, %cst_27 {dimension_numbers = #tpu.dot_dimension_numbers<[1], [0], [0], [1], [0, 0, 1, 1], [], []>} : vector<8x128xbf16>, vector<128x256xbf16>, vector<8x256xf32> -> vector<8x256xf32>
    %c0_28 = arith.constant 0 : index
    %c0_29 = arith.constant 0 : index
    %52 = vector.load %arg12[%c0_28, %c0_29] : memref<1x256xf32, #tpu.memory_space<vmem>>, vector<1x256xf32>
    %53 = vector.broadcast %52 : vector<1x256xf32> to vector<8x256xf32>
    %54 = arith.addf %51, %53 : vector<8x256xf32>
    %c4 = arith.constant 4 : index
    %55 = memref.load %arg2[%c4] : memref<5xf32, #tpu.memory_space<smem>>
    %cst_30 = arith.constant 0.000000e+00 : f32
    %56 = vector.broadcast %cst_30 : f32 to vector<8x256xf32>
    %57 = arith.cmpf oge, %54, %56 : vector<8x256xf32>
    %58 = vector.broadcast %55 : f32 to vector<8x256xf32>
    %59 = arith.mulf %58, %54 : vector<8x256xf32>
    %60 = arith.select %57, %54, %59 : vector<8x256xi1>, vector<8x256xf32>
    %61 = arith.truncf %60 : vector<8x256xf32> to vector<8x256xbf16>
    %c0_31 = arith.constant 0 : index
    %c0_32 = arith.constant 0 : index
    %62 = vector.load %arg13[%c0_31, %c0_32] : memref<256x128xbf16, #tpu.memory_space<vmem>>, vector<256x128xbf16>
    %cst_33 = arith.constant dense<0.000000e+00> : vector<8x128xf32>
    %63 = tpu.matmul %61, %62, %cst_33 {dimension_numbers = #tpu.dot_dimension_numbers<[1], [0], [0], [1], [0, 0, 1, 1], [], []>} : vector<8x256xbf16>, vector<256x128xbf16>, vector<8x128xf32> -> vector<8x128xf32>
    %c0_34 = arith.constant 0 : index
    %c0_35 = arith.constant 0 : index
    %64 = vector.load %arg14[%c0_34, %c0_35] : memref<1x128xf32, #tpu.memory_space<vmem>>, vector<1x128xf32>
    %65 = vector.broadcast %64 : vector<1x128xf32> to vector<8x128xf32>
    %66 = arith.addf %63, %65 : vector<8x128xf32>
    %c0_36 = arith.constant 0 : index
    %c0_37 = arith.constant 0 : index
    %67 = vector.load %arg15[%c0_36, %c0_37] : memref<8x128xf32, #tpu.memory_space<vmem>>, vector<8x128xf32>
    tpu.vector_store %arg15[%c0_36, %c0_37], %66 {strides = array<i32>} : memref<8x128xf32, #tpu.memory_space<vmem>>, vector<8x128xf32>,
    return
  }
  func.func @transform_0(%arg0: i32) -> (i32, i32) {
    %c0_i32 = arith.constant 0 : i32
    %c0_i32_0 = arith.constant 0 : i32
    return %arg0, %c0_i32 : i32, i32
  }
  func.func @transform_1(%arg0: i32) -> i32 {
    %c0_i32 = arith.constant 0 : i32
    %c0_i32_0 = arith.constant 0 : i32
    return %c0_i32 : i32
  }
  func.func @transform_2(%arg0: i32) -> (i32, i32) {
    %c0_i32 = arith.constant 0 : i32
    %c0_i32_0 = arith.constant 0 : i32
    %c0_i32_1 = arith.constant 0 : i32
    return %c0_i32, %c0_i32_0 : i32, i32
  }
  func.func @transform_3(%arg0: i32) -> (i32, i32) {
    %c0_i32 = arith.constant 0 : i32
    %c0_i32_0 = arith.constant 0 : i32
    %c0_i32_1 = arith.constant 0 : i32
    return %c0_i32, %c0_i32_0 : i32, i32
  }
  func.func @transform_4(%arg0: i32) -> (i32, i32) {
    %c0_i32 = arith.constant 0 : i32
    %c0_i32_0 = arith.constant 0 : i32
    %c0_i32_1 = arith.constant 0 : i32
    return %c0_i32, %c0_i32_0 : i32, i32
  }
  func.func @transform_5(%arg0: i32) -> (i32, i32) {
    %c0_i32 = arith.constant 0 : i32
    %c0_i32_0 = arith.constant 0 : i32
    %c0_i32_1 = arith.constant 0 : i32
    return %c0_i32, %c0_i32_0 : i32, i32
  }
  func.func @transform_6(%arg0: i32) -> (i32, i32) {
    %c0_i32 = arith.constant 0 : i32
    %c0_i32_0 = arith.constant 0 : i32
    %c0_i32_1 = arith.constant 0 : i32
    return %c0_i32, %c0_i32_0 : i32, i32
  }
  func.func @transform_7(%arg0: i32) -> (i32, i32) {
    %c0_i32 = arith.constant 0 : i32
    %c0_i32_0 = arith.constant 0 : i32
    %c0_i32_1 = arith.constant 0 : i32
    return %c0_i32, %c0_i32_0 : i32, i32
  }
  func.func @transform_8(%arg0: i32) -> (i32, i32) {
    %c0_i32 = arith.constant 0 : i32
    %c0_i32_0 = arith.constant 0 : i32
    %c0_i32_1 = arith.constant 0 : i32
    return %c0_i32, %c0_i32_0 : i32, i32
  }
  func.func @transform_9(%arg0: i32) -> (i32, i32) {
    %c0_i32 = arith.constant 0 : i32
    %c0_i32_0 = arith.constant 0 : i32
    %c0_i32_1 = arith.constant 0 : i32
    return %c0_i32, %c0_i32_0 : i32, i32
  }
  func.func @transform_10(%arg0: i32) -> (i32, i32) {
    %c0_i32 = arith.constant 0 : i32
    %c0_i32_0 = arith.constant 0 : i32
    %c0_i32_1 = arith.constant 0 : i32
    return %c0_i32, %c0_i32_0 : i32, i32
  }
  func.func @transform_11(%arg0: i32) -> (i32, i32) {
    %c0_i32 = arith.constant 0 : i32
    %c0_i32_0 = arith.constant 0 : i32
    %c0_i32_1 = arith.constant 0 : i32
    return %c0_i32, %c0_i32_0 : i32, i32
  }
  func.func @transform_12(%arg0: i32) -> (i32, i32) {
    %c0_i32 = arith.constant 0 : i32
    %c0_i32_0 = arith.constant 0 : i32
    %c0_i32_1 = arith.constant 0 : i32
    return %c0_i32, %c0_i32_0 : i32, i32
  }
  func.func @transform_13(%arg0: i32) -> (i32, i32) {
    %c0_i32 = arith.constant 0 : i32
    %c0_i32_0 = arith.constant 0 : i32
    %c0_i32_1 = arith.constant 0 : i32
    return %c0_i32, %c0_i32_0 : i32, i32
  }
  func.func @transform_14(%arg0: i32) -> (i32, i32) {
    %c0_i32 = arith.constant 0 : i32
    %c0_i32_0 = arith.constant 0 : i32
    return %arg0, %c0_i32 : i32, i32
  }
}

</mosaic_0001>

<llo_original>
// kernel: tpu_custom_call.1
$region0: #{tpu_custom_call.1}
  #allocation0 [shape = 'u32[]', space=smem, size = 0x4, offset = 0x4, fixed_abs, tag = 'smem constant byte address 0x4 - core index']
  #allocation1 [shape = 'u32[144,128]{1,0:T(1,128)}', space=vmem, size = 0x12000, scoped, tag = 'internal scratch']
  %s0 = inlined_call_operand.vmem [shape: f32[16,8], index: 0, kind: input, shape index: {}]
  %s1 = inlined_call_operand.vmem [shape: f32[5], index: 1, kind: input, shape index: {}]
  %s2 = inlined_call_operand.hbm [shape: bf16[8,256], index: 2, kind: input, shape index: {}]
  %s3 = inlined_call_operand.vmem [shape: f32[1,256], index: 3, kind: input, shape index: {}]
  %s4 = inlined_call_operand.vmem [shape: bf16[256,128], index: 4, kind: input, shape index: {}]
  %s5 = inlined_call_operand.vmem [shape: f32[1,128], index: 5, kind: input, shape index: {}]
  %s6 = inlined_call_operand.vmem [shape: bf16[128,64], index: 6, kind: input, shape index: {}]
  %s7 = inlined_call_operand.vmem [shape: f32[1,64], index: 7, kind: input, shape index: {}]
  %s8 = inlined_call_operand.hbm [shape: bf16[64,128], index: 8, kind: input, shape index: {}]
  %s9 = inlined_call_operand.vmem [shape: f32[1,128], index: 9, kind: input, shape index: {}]
  %s10 = inlined_call_operand.hbm [shape: bf16[128,256], index: 10, kind: input, shape index: {}]
  %s11 = inlined_call_operand.vmem [shape: f32[1,256], index: 11, kind: input, shape index: {}]
  %s12 = inlined_call_operand.hbm [shape: bf16[256,128], index: 12, kind: input, shape index: {}]
  %s13 = inlined_call_operand.vmem [shape: f32[1,128], index: 13, kind: input, shape index: {}]
  %s14 = inlined_call_operand.hbm [shape: f32[16,128], index: 14, kind: output, shape index: {}]
  %s15 = sld [smem:[#allocation0]]
  $region109: #{tpu_custom_call.1} parent=0
    _
  %s17 = ssub.s32 1, %s15
  %s18 = scalar_select 0, %s17, %s15
  $region1: #{tpu_custom_call.1} parent=0
    #allocation2 [shape = 'u8[512]{0}', space=smem, size = 0x200, scoped, tag = 'input window, operand 1, single buffered']
    #allocation3 [shape = 's32[2]{0}', space=sflag, size = 0x8, scoped, tag = 'scoped memory for tpu_custom_call.1']
    #allocation4 [shape = 's32[2]{0}', space=sflag, size = 0x8, scoped, tag = 'scoped memory for tpu_custom_call.1']
    #allocation5 [shape = 's32[2]{0}', space=sflag, size = 0x8, scoped, tag = 'scoped memory for tpu_custom_call.1']
    #allocation6 [shape = 'u8[4096]{0}', space=vmem, size = 0x1000, scoped, tag = 'input window, operand 2, single buffered']
    #allocation7 [shape = 'u8[16384]{0}', space=vmem, size = 0x4000, scoped, tag = 'input window, operand 8, single buffered']
    #allocation8 [shape = 's32[1]{0}', space=sflag, size = 0x4, scoped, tag = 'scoped memory for tpu_custom_call.1']
    #allocation9 [shape = 'u8[65536]{0}', space=vmem, size = 0x10000, scoped, tag = 'input window, operand 10, single buffered']
    #allocation10 [shape = 'u8[65536]{0}', space=vmem, size = 0x10000, scoped, tag = 'input window, operand 12, single buffered']
    #allocation11 [shape = 's32[1]{0}', space=sflag, size = 0x4, scoped, tag = 'scoped memory for tpu_custom_call.1']
    #allocation12 [shape = 'u8[8192]{0}', space=vmem, size = 0x2000, scoped, tag = 'output window, operand 0']
    %19 = vsyncpa [#allocation5], 0
    %20 = vsyncpa [#allocation3], 0
    %21 = vsyncpa [#allocation8], 0
    %22 = vsyncpa [#allocation11], 0
    %23 = vsyncpa [#allocation4], 0
    %s24 = scalar_lea.sflag [#allocation4], 1
    %25 = vsyncpa %s24, 0
    loop: start=0, step=1, limit=4
    $region2: #{tpu_custom_call.1} parent=1 // loop_pre_header
      _
    $region3: #{tpu_custom_call.1} parent=1 // loop_header
      %s27 = sphi 0, %s31
      %p28 = scmp.ge.s32.totalorder %s27, 4
      %s37 = sphi 0, %s39
      %s40 = sphi 0, %s37
      %s41 = sphi 0, %s40
      %s57 = sphi 0, %s41
      %s61 = sphi 0, %s61
      %s63 = sphi 0, %s61
      %s64 = sphi 0, %s63
      %s78 = sphi 0, %s64
      %s82 = sphi 0, %s82
      %s84 = sphi 0, %s82
      %s85 = sphi 0, %s84
      %s99 = sphi 0, %s85
      %s103 = sphi 0, %s103
      %s105 = sphi 0, %s103
      %s106 = sphi 0, %s105
      %s120 = sphi 0, %s106
      %s124 = sphi 0, %s124
      %s126 = sphi 0, %s124
      %s127 = sphi 0, %s126
      %s141 = sphi 0, %s127
      %s145 = sphi 0, %s145
      %s147 = sphi 0, %s145
      %s148 = sphi 0, %s147
      %s162 = sphi 0, %s148
      %s166 = sphi 0, %s166
      %s168 = sphi 0, %s166
      %s169 = sphi 0, %s168
      %s183 = sphi 0, %s169
      %s187 = sphi 0, %s187
      %s189 = sphi 0, %s187
      %s190 = sphi 0, %s189
      %s204 = sphi 0, %s190
      %s208 = sphi 0, %s208
      %s210 = sphi 0, %s208
      %s211 = sphi 0, %s210
      %s225 = sphi 0, %s211
      %s229 = sphi 0, %s229
      %s231 = sphi 0, %s229
      %s232 = sphi 0, %s231
      %s246 = sphi 0, %s232
      %s250 = sphi 0, %s250
      %s252 = sphi 0, %s250
      %s253 = sphi 0, %s252
      %s267 = sphi 0, %s253
      %s271 = sphi 0, %s271
      %s273 = sphi 0, %s271
      %s274 = sphi 0, %s273
      %s288 = sphi 0, %s274
      %s292 = sphi 0, %s292
      %s294 = sphi 0, %s292
      %s295 = sphi 0, %s294
      %s309 = sphi 0, %s295
      %s313 = sphi 0, %s313
      %s315 = sphi 0, %s313
      %s316 = sphi 0, %s315
      %s330 = sphi 0, %s316
      %s336 = sphi 0, %s338
      %s339 = sphi 0, %s336
      %s340 = sphi 0, %s339
      %s356 = sphi 0, %s340
    $region4: #{tpu_custom_call.1} parent=1 // loop_header_branch
      %30 = sbr.rel (%p28) target = $region8
    $region5: #{tpu_custom_call.1} parent=1 // loop_body
      %s32 = ssub.s32 %s27, 1
      %s33 = ssub.s32 %s27, 2
      %s34 = sadd.s32 %s27, 1
      %s35 = ssub.s32 %s27, %s34
      %p36 = scmp.eq.s32.totalorder %s35, 0
      %s38 = sadd.s32 %s37, 1
      %s39 = scalar_select %p36, %s37, %s38
      %p42 = pneg %p36
      %p43 = scmp.eq.s32.totalorder %s27, 1
      %p44 = por %p42, %p43
      %p45 = scmp.ne.s32.totalorder %s37, %s40
      %p46 = scmp.eq.s32.totalorder %s27, 0
      %p47 = por %p45, %p46
      %p48 = scmp.ne.s32.totalorder %s37, %s40
      %p49 = scmp.eq.s32.totalorder %s32, 1
      %p50 = por %p48, %p49
      %p51 = scmp.ne.s32.totalorder %s40, %s41
      %p52 = scmp.eq.s32.totalorder %s32, 0
      %p53 = por %p51, %p52
      %p54 = scmp.ne.s32.totalorder %s40, %s41
      %p55 = scmp.eq.s32.totalorder %s33, 1
      %p56 = por %p54, %p55
      %p58 = scmp.ne.s32.totalorder %s41, %s57
      %p59 = scmp.eq.s32.totalorder %s33, 0
      %p60 = por %p58, %p59
      %s62 = sadd.s32 %s61, 1
      %p65 = scmp.eq.s32.totalorder %s27, 1
      %p66 = scmp.ne.s32.totalorder %s61, %s63
      %p67 = scmp.eq.s32.totalorder %s27, 0
      %p68 = por %p66, %p67
      %p69 = scmp.ne.s32.totalorder %s61, %s63
      %p70 = scmp.eq.s32.totalorder %s32, 1
      %p71 = por %p69, %p70
      %p72 = scmp.ne.s32.totalorder %s63, %s64
      %p73 = scmp.eq.s32.totalorder %s32, 0
      %p74 = por %p72, %p73
      %p75 = scmp.ne.s32.totalorder %s63, %s64
      %p76 = scmp.eq.s32.totalorder %s33, 1
      %p77 = por %p75, %p76
      %p79 = scmp.ne.s32.totalorder %s64, %s78
      %p80 = scmp.eq.s32.totalorder %s33, 0
      %p81 = por %p79, %p80
      %s83 = sadd.s32 %s82, 1
      %p86 = scmp.eq.s32.totalorder %s27, 1
      %p87 = scmp.ne.s32.totalorder %s82, %s84
      %p88 = scmp.eq.s32.totalorder %s27, 0
      %p89 = por %p87, %p88
      %p90 = scmp.ne.s32.totalorder %s82, %s84
      %p91 = scmp.eq.s32.totalorder %s32, 1
      %p92 = por %p90, %p91
      %p93 = scmp.ne.s32.totalorder %s84, %s85
      %p94 = scmp.eq.s32.totalorder %s32, 0
      %p95 = por %p93, %p94
      %p96 = scmp.ne.s32.totalorder %s84, %s85
      %p97 = scmp.eq.s32.totalorder %s33, 1
      %p98 = por %p96, %p97
      %p100 = scmp.ne.s32.totalorder %s85, %s99
      %p101 = scmp.eq.s32.totalorder %s33, 0
      %p102 = por %p100, %p101
      %s104 = sadd.s32 %s103, 1
      %p107 = scmp.eq.s32.totalorder %s27, 1
      %p108 = scmp.ne.s32.totalorder %s103, %s105
      %p109 = scmp.eq.s32.totalorder %s27, 0
      %p110 = por %p108, %p109
      %p111 = scmp.ne.s32.totalorder %s103, %s105
      %p112 = scmp.eq.s32.totalorder %s32, 1
      %p113 = por %p111, %p112
      %p114 = scmp.ne.s32.totalorder %s105, %s106
      %p115 = scmp.eq.s32.totalorder %s32, 0
      %p116 = por %p114, %p115
      %p117 = scmp.ne.s32.totalorder %s105, %s106
      %p118 = scmp.eq.s32.totalorder %s33, 1
      %p119 = por %p117, %p118
      %p121 = scmp.ne.s32.totalorder %s106, %s120
      %p122 = scmp.eq.s32.totalorder %s33, 0
      %p123 = por %p121, %p122
      %s125 = sadd.s32 %s124, 1
      %p128 = scmp.eq.s32.totalorder %s27, 1
      %p129 = scmp.ne.s32.totalorder %s124, %s126
      %p130 = scmp.eq.s32.totalorder %s27, 0
      %p131 = por %p129, %p130
      %p132 = scmp.ne.s32.totalorder %s124, %s126
      %p133 = scmp.eq.s32.totalorder %s32, 1
      %p134 = por %p132, %p133
      %p135 = scmp.ne.s32.totalorder %s126, %s127
      %p136 = scmp.eq.s32.totalorder %s32, 0
      %p137 = por %p135, %p136
      %p138 = scmp.ne.s32.totalorder %s126, %s127
      %p139 = scmp.eq.s32.totalorder %s33, 1
      %p140 = por %p138, %p139
      %p142 = scmp.ne.s32.totalorder %s127, %s141
      %p143 = scmp.eq.s32.totalorder %s33, 0
      %p144 = por %p142, %p143
      %s146 = sadd.s32 %s145, 1
      %p149 = scmp.eq.s32.totalorder %s27, 1
      %p150 = scmp.ne.s32.totalorder %s145, %s147
      %p151 = scmp.eq.s32.totalorder %s27, 0
      %p152 = por %p150, %p151
      %p153 = scmp.ne.s32.totalorder %s145, %s147
      %p154 = scmp.eq.s32.totalorder %s32, 1
      %p155 = por %p153, %p154
      %p156 = scmp.ne.s32.totalorder %s147, %s148
      %p157 = scmp.eq.s32.totalorder %s32, 0
      %p158 = por %p156, %p157
      %p159 = scmp.ne.s32.totalorder %s147, %s148
      %p160 = scmp.eq.s32.totalorder %s33, 1
      %p161 = por %p159, %p160
      %p163 = scmp.ne.s32.totalorder %s148, %s162
      %p164 = scmp.eq.s32.totalorder %s33, 0
      %p165 = por %p163, %p164
      %s167 = sadd.s32 %s166, 1
      %p170 = scmp.eq.s32.totalorder %s27, 1
      %p171 = scmp.ne.s32.totalorder %s166, %s168
      %p172 = scmp.eq.s32.totalorder %s27, 0
      %p173 = por %p171, %p172
      %p174 = scmp.ne.s32.totalorder %s166, %s168
      %p175 = scmp.eq.s32.totalorder %s32, 1
      %p176 = por %p174, %p175
      %p177 = scmp.ne.s32.totalorder %s168, %s169
      %p178 = scmp.eq.s32.totalorder %s32, 0
      %p179 = por %p177, %p178
      %p180 = scmp.ne.s32.totalorder %s168, %s169
      %p181 = scmp.eq.s32.totalorder %s33, 1
      %p182 = por %p180, %p181
      %p184 = scmp.ne.s32.totalorder %s169, %s183
      %p185 = scmp.eq.s32.totalorder %s33, 0
      %p186 = por %p184, %p185
      %s188 = sadd.s32 %s187, 1
      %p191 = scmp.eq.s32.totalorder %s27, 1
      %p192 = scmp.ne.s32.totalorder %s187, %s189
      %p193 = scmp.eq.s32.totalorder %s27, 0
      %p194 = por %p192, %p193
      %p195 = scmp.ne.s32.totalorder %s187, %s189
      %p196 = scmp.eq.s32.totalorder %s32, 1
      %p197 = por %p195, %p196
      %p198 = scmp.ne.s32.totalorder %s189, %s190
      %p199 = scmp.eq.s32.totalorder %s32, 0
      %p200 = por %p198, %p199
      %p201 = scmp.ne.s32.totalorder %s189, %s190
      %p202 = scmp.eq.s32.totalorder %s33, 1
      %p203 = por %p201, %p202
      %p205 = scmp.ne.s32.totalorder %s190, %s204
      %p206 = scmp.eq.s32.totalorder %s33, 0
      %p207 = por %p205, %p206
      %s209 = sadd.s32 %s208, 1
      %p212 = scmp.eq.s32.totalorder %s27, 1
      %p213 = scmp.ne.s32.totalorder %s208, %s210
      %p214 = scmp.eq.s32.totalorder %s27, 0
      %p215 = por %p213, %p214
      %p216 = scmp.ne.s32.totalorder %s208, %s210
      %p217 = scmp.eq.s32.totalorder %s32, 1
      %p218 = por %p216, %p217
      %p219 = scmp.ne.s32.totalorder %s210, %s211
      %p220 = scmp.eq.s32.totalorder %s32, 0
      %p221 = por %p219, %p220
      %p222 = scmp.ne.s32.totalorder %s210, %s211
      %p223 = scmp.eq.s32.totalorder %s33, 1
      %p224 = por %p222, %p223
      %p226 = scmp.ne.s32.totalorder %s211, %s225
      %p227 = scmp.eq.s32.totalorder %s33, 0
      %p228 = por %p226, %p227
      %s230 = sadd.s32 %s229, 1
      %p233 = scmp.eq.s32.totalorder %s27, 1
      %p234 = scmp.ne.s32.totalorder %s229, %s231
      %p235 = scmp.eq.s32.totalorder %s27, 0
      %p236 = por %p234, %p235
      %p237 = scmp.ne.s32.totalorder %s229, %s231
      %p238 = scmp.eq.s32.totalorder %s32, 1
      %p239 = por %p237, %p238
      %p240 = scmp.ne.s32.totalorder %s231, %s232
      %p241 = scmp.eq.s32.totalorder %s32, 0
      %p242 = por %p240, %p241
      %p243 = scmp.ne.s32.totalorder %s231, %s232
      %p244 = scmp.eq.s32.totalorder %s33, 1
      %p245 = por %p243, %p244
      %p247 = scmp.ne.s32.totalorder %s232, %s246
      %p248 = scmp.eq.s32.totalorder %s33, 0
      %p249 = por %p247, %p248
      %s251 = sadd.s32 %s250, 1
      %p254 = scmp.eq.s32.totalorder %s27, 1
      %p255 = scmp.ne.s32.totalorder %s250, %s252
      %p256 = scmp.eq.s32.totalorder %s27, 0
      %p257 = por %p255, %p256
      %p258 = scmp.ne.s32.totalorder %s250, %s252
      %p259 = scmp.eq.s32.totalorder %s32, 1
      %p260 = por %p258, %p259
      %p261 = scmp.ne.s32.totalorder %s252, %s253
      %p262 = scmp.eq.s32.totalorder %s32, 0
      %p263 = por %p261, %p262
      %p264 = scmp.ne.s32.totalorder %s252, %s253
      %p265 = scmp.eq.s32.totalorder %s33, 1
      %p266 = por %p264, %p265
      %p268 = scmp.ne.s32.totalorder %s253, %s267
      %p269 = scmp.eq.s32.totalorder %s33, 0
      %p270 = por %p268, %p269
      %s272 = sadd.s32 %s271, 1
      %p275 = scmp.eq.s32.totalorder %s27, 1
      %p276 = scmp.ne.s32.totalorder %s271, %s273
      %p277 = scmp.eq.s32.totalorder %s27, 0
      %p278 = por %p276, %p277
      %p279 = scmp.ne.s32.totalorder %s271, %s273
      %p280 = scmp.eq.s32.totalorder %s32, 1
      %p281 = por %p279, %p280
      %p282 = scmp.ne.s32.totalorder %s273, %s274
      %p283 = scmp.eq.s32.totalorder %s32, 0
      %p284 = por %p282, %p283
      %p285 = scmp.ne.s32.totalorder %s273, %s274
      %p286 = scmp.eq.s32.totalorder %s33, 1
      %p287 = por %p285, %p286
      %p289 = scmp.ne.s32.totalorder %s274, %s288
      %p290 = scmp.eq.s32.totalorder %s33, 0
      %p291 = por %p289, %p290
      %s293 = sadd.s32 %s292, 1
      %p296 = scmp.eq.s32.totalorder %s27, 1
      %p297 = scmp.ne.s32.totalorder %s292, %s294
      %p298 = scmp.eq.s32.totalorder %s27, 0
      %p299 = por %p297, %p298
      %p300 = scmp.ne.s32.totalorder %s292, %s294
      %p301 = scmp.eq.s32.totalorder %s32, 1
      %p302 = por %p300, %p301
      %p303 = scmp.ne.s32.totalorder %s294, %s295
      %p304 = scmp.eq.s32.totalorder %s32, 0
      %p305 = por %p303, %p304
      %p306 = scmp.ne.s32.totalorder %s294, %s295
      %p307 = scmp.eq.s32.totalorder %s33, 1
      %p308 = por %p306, %p307
      %p310 = scmp.ne.s32.totalorder %s295, %s309
      %p311 = scmp.eq.s32.totalorder %s33, 0
      %p312 = por %p310, %p311
      %s314 = sadd.s32 %s313, 1
      %p317 = scmp.eq.s32.totalorder %s27, 1
      %p318 = scmp.ne.s32.totalorder %s313, %s315
      %p319 = scmp.eq.s32.totalorder %s27, 0
      %p320 = por %p318, %p319
      %p321 = scmp.ne.s32.totalorder %s313, %s315
      %p322 = scmp.eq.s32.totalorder %s32, 1
      %p323 = por %p321, %p322
      %p324 = scmp.ne.s32.totalorder %s315, %s316
      %p325 = scmp.eq.s32.totalorder %s32, 0
      %p326 = por %p324, %p325
      %p327 = scmp.ne.s32.totalorder %s315, %s316
      %p328 = scmp.eq.s32.totalorder %s33, 1
      %p329 = por %p327, %p328
      %p331 = scmp.ne.s32.totalorder %s316, %s330
      %p332 = scmp.eq.s32.totalorder %s33, 0
      %p333 = por %p331, %p332
      %s334 = ssub.s32 %s27, %s34
      %p335 = scmp.eq.s32.totalorder %s334, 0
      %s337 = sadd.s32 %s336, 1
      %s338 = scalar_select %p335, %s336, %s337
      %p341 = pneg %p335
      %p342 = scmp.eq.s32.totalorder %s27, 1
      %p343 = por %p341, %p342
      %p344 = scmp.ne.s32.totalorder %s336, %s339
      %p345 = scmp.eq.s32.totalorder %s27, 0
      %p346 = por %p344, %p345
      %p347 = scmp.ne.s32.totalorder %s336, %s339
      %p348 = scmp.eq.s32.totalorder %s32, 1
      %p349 = por %p347, %p348
      %p350 = scmp.ne.s32.totalorder %s339, %s340
      %p351 = scmp.eq.s32.totalorder %s32, 0
      %p352 = por %p350, %p351
      %p353 = scmp.ne.s32.totalorder %s339, %s340
      %p354 = scmp.eq.s32.totalorder %s33, 1
      %p355 = por %p353, %p354
      %p357 = scmp.ne.s32.totalorder %s340, %s356
      %p358 = scmp.eq.s32.totalorder %s33, 0
      %p359 = por %p357, %p358
      %p360 = scmp.le.s32.totalorder 1, %s27
      %p361 = scmp.lt.s32.totalorder %s27, 3
      %p362 = pnand %p360, %p361
      %p363 = pneg %p362
      // Predicated region
      $region9: #{tpu_custom_call.1} parent=5 // pred_check
        _
      $region10: #{tpu_custom_call.1} parent=5 // pred_check_branch
        %365 = sbr.rel (%p362) target = $region12
      $region11: #{tpu_custom_call.1} parent=5 // pred_region
        %s366 = ssub.s32 %s27, 1
        // Predicated region
        $region13: #{tpu_custom_call.1} parent=11 // pred_check
          %p367 = pneg %p74
        $region14: #{tpu_custom_call.1} parent=11 // pred_check_branch
          %369 = sbr.rel (%p367) target = $region16
        $region15: #{tpu_custom_call.1} parent=11 // pred_region
          %s371 = ssub.s32 16, 16
          %372 = vsyncadd [#allocation5], %s371
          %s374 = sshll.u32 %s1, 4
          %s375 = int_to_ptr.vmem [resolvable:$true] %s374
          %377 = dma.vmem_to_smem %s375, 16, [#allocation2], [#allocation5]
        $region16: #{tpu_custom_call.1} parent=11 // pred_fallthru
          _
        // Predicated region
        $region17: #{tpu_custom_call.1} parent=11 // pred_check
          %p378 = pneg %p95
        $region18: #{tpu_custom_call.1} parent=11 // pred_check_branch
          %380 = sbr.rel (%p378) target = $region20
        $region19: #{tpu_custom_call.1} parent=11 // pred_region
          %s382 = ssub.s32 128, 128
          %383 = vsyncadd [#allocation3], %s382
          %s385 = sshll.u32 [#allocation6], 4
          %s386 = int_to_ptr.vmem [resolvable:$true] %s385
          %388 = dma.hbm_to_vmem [thread:$0]  %s2, 128, %s386, [#allocation3]
        $region20: #{tpu_custom_call.1} parent=11 // pred_fallthru
          _
        // Predicated region
        $region21: #{tpu_custom_call.1} parent=11 // pred_check
          %p389 = pneg %p116
        $region22: #{tpu_custom_call.1} parent=11 // pred_check_branch
          %391 = sbr.rel (%p389) target = $region24
        $region23: #{tpu_custom_call.1} parent=11 // pred_region
          _
        $region24: #{tpu_custom_call.1} parent=11 // pred_fallthru
          _
        // Predicated region
        $region25: #{tpu_custom_call.1} parent=11 // pred_check
          %p392 = pneg %p137
        $region26: #{tpu_custom_call.1} parent=11 // pred_check_branch
          %394 = sbr.rel (%p392) target = $region28
        $region27: #{tpu_custom_call.1} parent=11 // pred_region
          _
        $region28: #{tpu_custom_call.1} parent=11 // pred_fallthru
          _
        // Predicated region
        $region29: #{tpu_custom_call.1} parent=11 // pred_check
          %p395 = pneg %p158
        $region30: #{tpu_custom_call.1} parent=11 // pred_check_branch
          %397 = sbr.rel (%p395) target = $region32
        $region31: #{tpu_custom_call.1} parent=11 // pred_region
          _
        $region32: #{tpu_custom_call.1} parent=11 // pred_fallthru
          _
        // Predicated region
        $region33: #{tpu_custom_call.1} parent=11 // pred_check
          %p398 = pneg %p179
        $region34: #{tpu_custom_call.1} parent=11 // pred_check_branch
          %400 = sbr.rel (%p398) target = $region36
        $region35: #{tpu_custom_call.1} parent=11 // pred_region
          _
        $region36: #{tpu_custom_call.1} parent=11 // pred_fallthru
          _
        // Predicated region
        $region37: #{tpu_custom_call.1} parent=11 // pred_check
          %p401 = pneg %p200
        $region38: #{tpu_custom_call.1} parent=11 // pred_check_branch
          %403 = sbr.rel (%p401) target = $region40
        $region39: #{tpu_custom_call.1} parent=11 // pred_region
          _
        $region40: #{tpu_custom_call.1} parent=11 // pred_fallthru
          _
        // Predicated region
        $region41: #{tpu_custom_call.1} parent=11 // pred_check
          %p404 = pneg %p221
        $region42: #{tpu_custom_call.1} parent=11 // pred_check_branch
          %406 = sbr.rel (%p404) target = $region44
        $region43: #{tpu_custom_call.1} parent=11 // pred_region
          %s408 = ssub.s32 512, 512
          %409 = vsyncadd [#allocation8], %s408
          %s410 = sshll.u32 [#allocation7], 4
          %s411 = int_to_ptr.vmem [resolvable:$true] %s410
          %416 = dma.hbm_to_vmem [thread:$0]  %s8, 512, %s411, [#allocation8], 64, 64, 4
        $region44: #{tpu_custom_call.1} parent=11 // pred_fallthru
          _
        // Predicated region
        $region45: #{tpu_custom_call.1} parent=11 // pred_check
          %p417 = pneg %p242
        $region46: #{tpu_custom_call.1} parent=11 // pred_check_branch
          %419 = sbr.rel (%p417) target = $region48
        $region47: #{tpu_custom_call.1} parent=11 // pred_region
          _
        $region48: #{tpu_custom_call.1} parent=11 // pred_fallthru
          _
        // Predicated region
        $region49: #{tpu_custom_call.1} parent=11 // pred_check
          %p420 = pneg %p263
        $region50: #{tpu_custom_call.1} parent=11 // pred_check_branch
          %422 = sbr.rel (%p420) target = $region52
        $region51: #{tpu_custom_call.1} parent=11 // pred_region
          %s424 = ssub.s32 2048, 2048
          %425 = vsyncadd [#allocation8], %s424
          %s426 = sshll.u32 [#allocation9], 4
          %s427 = int_to_ptr.vmem [resolvable:$true] %s426
          %432 = dma.hbm_to_vmem [thread:$0]  %s10, 2048, %s427, [#allocation8], 128, 128, 8
        $region52: #{tpu_custom_call.1} parent=11 // pred_fallthru
          _
        // Predicated region
        $region53: #{tpu_custom_call.1} parent=11 // pred_check
          %p433 = pneg %p284
        $region54: #{tpu_custom_call.1} parent=11 // pred_check_branch
          %435 = sbr.rel (%p433) target = $region56
        $region55: #{tpu_custom_call.1} parent=11 // pred_region
          _
        $region56: #{tpu_custom_call.1} parent=11 // pred_fallthru
          _
        // Predicated region
        $region57: #{tpu_custom_call.1} parent=11 // pred_check
          %p436 = pneg %p305
        $region58: #{tpu_custom_call.1} parent=11 // pred_check_branch
          %438 = sbr.rel (%p436) target = $region60
        $region59: #{tpu_custom_call.1} parent=11 // pred_region
          %s440 = ssub.s32 2048, 2048
          %441 = vsyncadd [#allocation11], %s440
          %s442 = sshll.u32 [#allocation10], 4
          %s443 = int_to_ptr.vmem [resolvable:$true] %s442
          %448 = dma.hbm_to_vmem [thread:$0]  %s12, 2048, %s443, [#allocation11], 64, 64, 4
        $region60: #{tpu_custom_call.1} parent=11 // pred_fallthru
          _
        // Predicated region
        $region61: #{tpu_custom_call.1} parent=11 // pred_check
          %p449 = pneg %p326
        $region62: #{tpu_custom_call.1} parent=11 // pred_check_branch
          %451 = sbr.rel (%p449) target = $region64
        $region63: #{tpu_custom_call.1} parent=11 // pred_region
          _
        $region64: #{tpu_custom_call.1} parent=11 // pred_fallthru
          _
      $region12: #{tpu_custom_call.1} parent=5 // pred_fallthru
        _
      %p452 = scmp.lt.s32.totalorder %s27, 2
      // Predicated region
      $region65: #{tpu_custom_call.1} parent=5 // pred_check
        %p453 = pneg %p452
      $region66: #{tpu_custom_call.1} parent=5 // pred_check_branch
        %455 = sbr.rel (%p453) target = $region68
      $region67: #{tpu_custom_call.1} parent=5 // pred_region
        // Predicated region
        $region69: #{tpu_custom_call.1} parent=67 // pred_check
          %p456 = pneg %p47
        $region70: #{tpu_custom_call.1} parent=67 // pred_check_branch
          %458 = sbr.rel (%p456) target = $region72
        $region71: #{tpu_custom_call.1} parent=67 // pred_region
          %p459 = scmp.lt.s32.totalorder %s27, 1
          %s460 = scalar_select %p459, %s27, 1
          %s461 = smul.addr %s460, 8
          %s462 = scalar_lea.vmem %s0, %s461
        $region72: #{tpu_custom_call.1} parent=67 // pred_fallthru
          _
      $region68: #{tpu_custom_call.1} parent=5 // pred_fallthru
        _
      %p463 = scmp.le.s32.totalorder 1, %s27
      %p464 = scmp.lt.s32.totalorder %s27, 3
      %p465 = pnand %p463, %p464
      %p466 = pneg %p465
      // Predicated region
      $region73: #{tpu_custom_call.1} parent=5 // pred_check
        _
      $region74: #{tpu_custom_call.1} parent=5 // pred_check_branch
        %468 = sbr.rel (%p465) target = $region76
      $region75: #{tpu_custom_call.1} parent=5 // pred_region
        %s469 = ssub.s32 %s27, 1
        // Predicated region
        $region77: #{tpu_custom_call.1} parent=75 // pred_check
          %p470 = pneg %p74
        $region78: #{tpu_custom_call.1} parent=75 // pred_check_branch
          %472 = sbr.rel (%p470) target = $region80
        $region79: #{tpu_custom_call.1} parent=75 // pred_region
          %473 = dma.done [#allocation5], 16
        $region80: #{tpu_custom_call.1} parent=75 // pred_fallthru
          _
        // Predicated region
        $region81: #{tpu_custom_call.1} parent=75 // pred_check
          %p474 = pneg %p95
        $region82: #{tpu_custom_call.1} parent=75 // pred_check_branch
          %476 = sbr.rel (%p474) target = $region84
        $region83: #{tpu_custom_call.1} parent=75 // pred_region
          %477 = dma.done [#allocation3], 128
        $region84: #{tpu_custom_call.1} parent=75 // pred_fallthru
          _
        // Predicated region
        $region85: #{tpu_custom_call.1} parent=75 // pred_check
          %p478 = pneg %p221
        $region86: #{tpu_custom_call.1} parent=75 // pred_check_branch
          %480 = sbr.rel (%p478) target = $region88
        $region87: #{tpu_custom_call.1} parent=75 // pred_region
          %481 = dma.done [#allocation8], 512
        $region88: #{tpu_custom_call.1} parent=75 // pred_fallthru
          _
        // Predicated region
        $region89: #{tpu_custom_call.1} parent=75 // pred_check
          %p482 = pneg %p263
        $region90: #{tpu_custom_call.1} parent=75 // pred_check_branch
          %484 = sbr.rel (%p482) target = $region92
        $region91: #{tpu_custom_call.1} parent=75 // pred_region
          %485 = dma.done [#allocation8], 2048
        $region92: #{tpu_custom_call.1} parent=75 // pred_fallthru
          _
        // Predicated region
        $region93: #{tpu_custom_call.1} parent=75 // pred_check
          %p486 = pneg %p305
        $region94: #{tpu_custom_call.1} parent=75 // pred_check_branch
          %488 = sbr.rel (%p486) target = $region96
        $region95: #{tpu_custom_call.1} parent=75 // pred_region
          %489 = dma.done [#allocation11], 2048
        $region96: #{tpu_custom_call.1} parent=75 // pred_fallthru
          _
        %490 = sfence
        %p491 = scmp.lt.s32.totalorder %s32, 1
        %s492 = scalar_select %p491, %s32, 1
        %s493 = smul.addr %s492, 8
        %s494 = scalar_lea.vmem %s0, %s493
        %p495 = pneg %p53
        %p496 = pneg %p50
        %p497 = pneg %p74
        %p498 = pneg %p71
        %p499 = pneg %p95
        %p500 = pneg %p92
        %p501 = pneg %p116
        %p502 = pneg %p113
        %p503 = pneg %p137
        %p504 = pneg %p134
        %p505 = pneg %p158
        %p506 = pneg %p155
        %p507 = pneg %p179
        %p508 = pneg %p176
        %p509 = pneg %p200
        %p510 = pneg %p197
        %p511 = pneg %p221
        %p512 = pneg %p218
        %p513 = pneg %p242
        %p514 = pneg %p239
        %p515 = pneg %p263
        %p516 = pneg %p260
        %p517 = pneg %p284
        %p518 = pneg %p281
        %p519 = pneg %p305
        %p520 = pneg %p302
        %p521 = pneg %p326
        %p522 = pneg %p323
        %p523 = pneg %p352
        %p524 = pneg %p349
        %s525 = sand.u32 %s339, 1
        %s526 = scalar_lea.sflag [#allocation4], %s525
        %s527 = sand.u32 %s339, 1
        %s528 = smul.addr %s527, 8
        %s529 = scalar_lea.vmem [#allocation12], %s528
        %p530 = scmp.lt.s32.totalorder %s32, 1
        %s531 = scalar_select %p530, %s32, 1
        %s532 = smul.addr %s531, 8
        %s533 = scalar_lea.vmem %s0, %s532
        %v535 = vld [vmem:[%s533] sm:$0xff]
        %v536 = vpack.c.bf16 %v535, %v535
        %v537 = vld [vmem:[#allocation6] sm:$0xff]
        %v538 = vld [vmem:[%s3] sm:$0x3]
        %v540 = vlaneseq
        %v541 = vshrl.u32 %v540, 7
        %v542 = vsub.s32 0, %v541
        %v543 = vrot.slane %v538, %v542
        %v544 = vlaneseq
        %v545 = vshrl.u32 %v544, 7
        %v546 = vsub.s32 1, %v545
        %v547 = vrot.slane %v538, %v546
        %v551 = vunpack.c.l.b16 %v537
        %v552 = vunpack.c.h.b16 %v537
        %v553 = vpack.c.b16 %v551, %v551
        %v554 = vpack.c.b16 %v552, %v552
        %vm555 = vcmask 64512
        %v557 = vsel %vm555, %v536, 0
        %vm559 = vcmask 1043456
        %v561 = vsel %vm559, %v553, 0
        %v564 = vsel %vm559, %v554, 0
        %566 = vmatprep.subr.bf16.mxu0 %v564
        %567 = vmatpush1.bf16.msra.mxu0 %v561
        %568 = vmatprep.subr.bf16.mxu0 0
        %569 = vmatpush1.bf16.msra.mxu0 0
        %570 = vmatprep.subr.bf16.mxu0 0
        %571 = vmatpush1.bf16.msra.mxu0 0
        %572 = vmatprep.subr.bf16.mxu0 0
        %573 = vmatpush1.bf16.msra.mxu0 0
        %574 = vmatprep.subr.bf16.mxu0 0
        %575 = vmatpush1.bf16.msra.mxu0 0
        %576 = vmatprep.subr.bf16.mxu0 0
        %577 = vmatpush1.bf16.msra.mxu0 0
        %578 = vmatprep.subr.bf16.mxu0 0
        %579 = vmatpush1.bf16.msra.mxu0 0
        %580 = vmatprep.subr.bf16.mxu0 0
        %581 = vmatpush1.bf16.msra.mxu0 0
        %582 = vmatprep.subr.bf16.mxu0 0
        %583 = vmatpush1.bf16.msra.mxu0 0
        %584 = vmatprep.subr.bf16.mxu0 0
        %585 = vmatpush1.bf16.msra.mxu0 0
        %586 = vmatprep.subr.bf16.mxu0 0
        %587 = vmatpush1.bf16.msra.mxu0 0
        %588 = vmatprep.subr.bf16.mxu0 0
        %589 = vmatpush1.bf16.msra.mxu0 0
        %590 = vmatprep.subr.bf16.mxu0 0
        %591 = vmatpush1.bf16.msra.mxu0 0
        %592 = vmatprep.subr.bf16.mxu0 0
        %593 = vmatpush1.bf16.msra.mxu0 0
        %594 = vmatprep.subr.bf16.mxu0 0
        %595 = vmatpush1.bf16.msra.mxu0 0
        %596 = vmatprep.subr.bf16.mxu0 0
        %597 = vmatpush1.bf16.msra.mxu0 0
        %598 = vmatprep.mubr.bf16.mxu0 0
        %599 = vmatmul.mubr.bf16.gmra.mrb[0].mxu0 %v557
        %v600 = vpop.f32.mrb[0].mxu0
        %v601 = vadd.f32 %v543, %v600
        %v602 = vpop.f32.mrb[0].mxu0
        %v603 = vadd.f32 %v547, %v602
        %v604 = vpop.f32.mrb[0].mxu0
        %v605 = vpop.f32.mrb[0].mxu0
        %606 = vdwg.mxu0
        %s607 = sld [smem:[#allocation2]]
        %vm608 = vcmp.ge.f32.partialorder %v601, 0.0
        %vm609 = vcmp.ge.f32.partialorder %v603, 0.0
        %v610 = vstv %s607
        %v611 = vmul.f32 %v610, %v601
        %v612 = vmul.f32 %v610, %v603
        %v613 = vsel %vm608, %v601, %v611
        %v614 = vsel %vm609, %v603, %v612
        %v615 = vpack.c.bf16 %v613, %v613
        %v616 = vpack.c.bf16 %v614, %v614
        %v617 = vld [vmem:[%s4] sm:$0xf]
        %v618 = vld [vmem:[%s4 + $0x4] sm:$0xf]
        %v619 = vld [vmem:[%s4 + $0x8] sm:$0xf]
        %v620 = vld [vmem:[%s4 + $0xc] sm:$0xf]
        %v621 = vld [vmem:[%s4 + $0x10] sm:$0xf]
        %v622 = vld [vmem:[%s4 + $0x14] sm:$0xf]
        %v623 = vld [vmem:[%s4 + $0x18] sm:$0xf]
        %v624 = vld [vmem:[%s4 + $0x1c] sm:$0xf]
        %v625 = vld [vmem:[%s4 + $0x20] sm:$0xf]
        %v626 = vld [vmem:[%s4 + $0x24] sm:$0xf]
        %v627 = vld [vmem:[%s4 + $0x28] sm:$0xf]
        %v628 = vld [vmem:[%s4 + $0x2c] sm:$0xf]
        %v629 = vld [vmem:[%s4 + $0x30] sm:$0xf]
        %v630 = vld [vmem:[%s4 + $0x34] sm:$0xf]
        %v631 = vld [vmem:[%s4 + $0x38] sm:$0xf]
        %v632 = vld [vmem:[%s4 + $0x3c] sm:$0xf]
        %v633 = vld [vmem:[%s4 + $0x40] sm:$0xf]
        %v634 = vld [vmem:[%s4 + $0x44] sm:$0xf]
        %v635 = vld [vmem:[%s4 + $0x48] sm:$0xf]
        %v636 = vld [vmem:[%s4 + $0x4c] sm:$0xf]
        %v637 = vld [vmem:[%s4 + $0x50] sm:$0xf]
        %v638 = vld [vmem:[%s4 + $0x54] sm:$0xf]
        %v639 = vld [vmem:[%s4 + $0x58] sm:$0xf]
        %v640 = vld [vmem:[%s4 + $0x5c] sm:$0xf]
        %v641 = vld [vmem:[%s4 + $0x60] sm:$0xf]
        %v642 = vld [vmem:[%s4 + $0x64] sm:$0xf]
        %v643 = vld [vmem:[%s4 + $0x68] sm:$0xf]
        %v644 = vld [vmem:[%s4 + $0x6c] sm:$0xf]
        %v645 = vld [vmem:[%s4 + $0x70] sm:$0xf]
        %v646 = vld [vmem:[%s4 + $0x74] sm:$0xf]
        %v647 = vld [vmem:[%s4 + $0x78] sm:$0xf]
        %v648 = vld [vmem:[%s4 + $0x7c] sm:$0xf]
        %v649 = vld [vmem:[%s5] sm:$0x1]
        %v651 = vlaneseq
        %v652 = vshrl.u32 %v651, 7
        %v653 = vsub.s32 0, %v652
        %v654 = vrot.slane %v649, %v653
        %v688 = vunpack.c.l.b16 %v617
        %v689 = vunpack.c.l.b16 %v618
        %v690 = vunpack.c.l.b16 %v619
        %v691 = vunpack.c.l.b16 %v620
        %v692 = vunpack.c.l.b16 %v621
        %v693 = vunpack.c.l.b16 %v622
        %v694 = vunpack.c.l.b16 %v623
        %v695 = vunpack.c.l.b16 %v624
        %v696 = vunpack.c.l.b16 %v625
        %v697 = vunpack.c.l.b16 %v626
        %v698 = vunpack.c.l.b16 %v627
        %v699 = vunpack.c.l.b16 %v628
        %v700 = vunpack.c.l.b16 %v629
        %v701 = vunpack.c.l.b16 %v630
        %v702 = vunpack.c.l.b16 %v631
        %v703 = vunpack.c.l.b16 %v632
        %v704 = vunpack.c.l.b16 %v633
        %v705 = vunpack.c.l.b16 %v634
        %v706 = vunpack.c.l.b16 %v635
        %v707 = vunpack.c.l.b16 %v636
        %v708 = vunpack.c.l.b16 %v637
        %v709 = vunpack.c.l.b16 %v638
        %v710 = vunpack.c.l.b16 %v639
        %v711 = vunpack.c.l.b16 %v640
        %v712 = vunpack.c.l.b16 %v641
        %v713 = vunpack.c.l.b16 %v642
        %v714 = vunpack.c.l.b16 %v643
        %v715 = vunpack.c.l.b16 %v644
        %v716 = vunpack.c.l.b16 %v645
        %v717 = vunpack.c.l.b16 %v646
        %v718 = vunpack.c.l.b16 %v647
        %v719 = vunpack.c.l.b16 %v648
        %v720 = vpack.c.b16 %v689, %v688
        %v721 = vpack.c.b16 %v691, %v690
        %v722 = vpack.c.b16 %v693, %v692
        %v723 = vpack.c.b16 %v695, %v694
        %v724 = vpack.c.b16 %v697, %v696
        %v725 = vpack.c.b16 %v699, %v698
        %v726 = vpack.c.b16 %v701, %v700
        %v727 = vpack.c.b16 %v703, %v702
        %v728 = vpack.c.b16 %v705, %v704
        %v729 = vpack.c.b16 %v707, %v706
        %v730 = vpack.c.b16 %v709, %v708
        %v731 = vpack.c.b16 %v711, %v710
        %v732 = vpack.c.b16 %v713, %v712
        %v733 = vpack.c.b16 %v715, %v714
        %v734 = vpack.c.b16 %v717, %v716
        %v735 = vpack.c.b16 %v719, %v718
        %752 = vmatprep.subr.bf16.mxu0 0
        %753 = vmatpush1.bf16.msra.mxu0 %v720
        %754 = vmatprep.subr.bf16.mxu0 0
        %755 = vmatpush1.bf16.msra.mxu0 %v721
        %756 = vmatprep.subr.bf16.mxu0 0
        %757 = vmatpush1.bf16.msra.mxu0 %v722
        %758 = vmatprep.subr.bf16.mxu0 0
        %759 = vmatpush1.bf16.msra.mxu0 %v723
        %760 = vmatprep.subr.bf16.mxu0 0
        %761 = vmatpush1.bf16.msra.mxu0 %v724
        %762 = vmatprep.subr.bf16.mxu0 0
        %763 = vmatpush1.bf16.msra.mxu0 %v725
        %764 = vmatprep.subr.bf16.mxu0 0
        %765 = vmatpush1.bf16.msra.mxu0 %v726
        %766 = vmatprep.subr.bf16.mxu0 0
        %767 = vmatpush1.bf16.msra.mxu0 %v727
        %768 = vmatprep.subr.bf16.mxu0 0
        %769 = vmatpush1.bf16.msra.mxu0 %v728
        %770 = vmatprep.subr.bf16.mxu0 0
        %771 = vmatpush1.bf16.msra.mxu0 %v729
        %772 = vmatprep.subr.bf16.mxu0 0
        %773 = vmatpush1.bf16.msra.mxu0 %v730
        %774 = vmatprep.subr.bf16.mxu0 0
        %775 = vmatpush1.bf16.msra.mxu0 %v731
        %776 = vmatprep.subr.bf16.mxu0 0
        %777 = vmatpush1.bf16.msra.mxu0 %v732
        %778 = vmatprep.subr.bf16.mxu0 0
        %779 = vmatpush1.bf16.msra.mxu0 %v733
        %780 = vmatprep.subr.bf16.mxu0 0
        %781 = vmatpush1.bf16.msra.mxu0 %v734
        %782 = vmatprep.subr.bf16.mxu0 0
        %783 = vmatpush1.bf16.msra.mxu0 %v735
        %784 = vmatprep.mubr.bf16.mxu0 %v616
        %785 = vmatmul.mubr.bf16.gmra.mrb[0].mxu0 %v615
        %v786 = vpop.f32.mrb[0].mxu0
        %v787 = vadd.f32 %v654, %v786
        %v788 = vpop.f32.mrb[0].mxu0
        %v789 = vpop.f32.mrb[0].mxu0
        %v790 = vpop.f32.mrb[0].mxu0
        %791 = vdwg.mxu0
        %s792 = sld [smem:[#allocation2 + $0x1]]
        %vm793 = vcmp.ge.f32.partialorder %v787, 0.0
        %v794 = vstv %s792
        %v795 = vmul.f32 %v794, %v787
        %v796 = vsel %vm793, %v787, %v795
        %v797 = vpack.c.bf16 %v796, %v796
        %v798 = vld [vmem:[%s6] sm:$0xf]
        %v799 = vld [vmem:[%s6 + $0x4] sm:$0xf]
        %v800 = vld [vmem:[%s6 + $0x8] sm:$0xf]
        %v801 = vld [vmem:[%s6 + $0xc] sm:$0xf]
        %v802 = vld [vmem:[%s6 + $0x10] sm:$0xf]
        %v803 = vld [vmem:[%s6 + $0x14] sm:$0xf]
        %v804 = vld [vmem:[%s6 + $0x18] sm:$0xf]
        %v805 = vld [vmem:[%s6 + $0x1c] sm:$0xf]
        %v806 = vld [vmem:[%s6 + $0x20] sm:$0xf]
        %v807 = vld [vmem:[%s6 + $0x24] sm:$0xf]
        %v808 = vld [vmem:[%s6 + $0x28] sm:$0xf]
        %v809 = vld [vmem:[%s6 + $0x2c] sm:$0xf]
        %v810 = vld [vmem:[%s6 + $0x30] sm:$0xf]
        %v811 = vld [vmem:[%s6 + $0x34] sm:$0xf]
        %v812 = vld [vmem:[%s6 + $0x38] sm:$0xf]
        %v813 = vld [vmem:[%s6 + $0x3c] sm:$0xf]
        %v814 = vld [vmem:[%s7] sm:$0x1]
        %v816 = vlaneseq
        %v817 = vshrl.u32 %v816, 7
        %v818 = vsub.s32 0, %v817
        %v819 = vrot.slane %v814, %v818
        %v837 = vunpack.c.l.b16 %v798
        %v838 = vunpack.c.l.b16 %v799
        %v839 = vunpack.c.l.b16 %v800
        %v840 = vunpack.c.l.b16 %v801
        %v841 = vunpack.c.l.b16 %v802
        %v842 = vunpack.c.l.b16 %v803
        %v843 = vunpack.c.l.b16 %v804
        %v844 = vunpack.c.l.b16 %v805
        %v845 = vunpack.c.l.b16 %v806
        %v846 = vunpack.c.l.b16 %v807
        %v847 = vunpack.c.l.b16 %v808
        %v848 = vunpack.c.l.b16 %v809
        %v849 = vunpack.c.l.b16 %v810
        %v850 = vunpack.c.l.b16 %v811
        %v851 = vunpack.c.l.b16 %v812
        %v852 = vunpack.c.l.b16 %v813
        %v853 = vpack.c.b16 %v838, %v837
        %v854 = vpack.c.b16 %v840, %v839
        %v855 = vpack.c.b16 %v842, %v841
        %v856 = vpack.c.b16 %v844, %v843
        %v857 = vpack.c.b16 %v846, %v845
        %v858 = vpack.c.b16 %v848, %v847
        %v859 = vpack.c.b16 %v850, %v849
        %v860 = vpack.c.b16 %v852, %v851
        %869 = vmatprep.subr.bf16.mxu0 0
        %870 = vmatpush1.bf16.msra.mxu0 %v853
        %871 = vmatprep.subr.bf16.mxu0 0
        %872 = vmatpush1.bf16.msra.mxu0 %v854
        %873 = vmatprep.subr.bf16.mxu0 0
        %874 = vmatpush1.bf16.msra.mxu0 %v855
        %875 = vmatprep.subr.bf16.mxu0 0
        %876 = vmatpush1.bf16.msra.mxu0 %v856
        %877 = vmatprep.subr.bf16.mxu0 0
        %878 = vmatpush1.bf16.msra.mxu0 %v857
        %879 = vmatprep.subr.bf16.mxu0 0
        %880 = vmatpush1.bf16.msra.mxu0 %v858
        %881 = vmatprep.subr.bf16.mxu0 0
        %882 = vmatpush1.bf16.msra.mxu0 %v859
        %883 = vmatprep.subr.bf16.mxu0 0
        %884 = vmatpush1.bf16.msra.mxu0 %v860
        %885 = vmatprep.subr.bf16.mxu0 0
        %886 = vmatpush1.bf16.msra.mxu0 0
        %887 = vmatprep.subr.bf16.mxu0 0
        %888 = vmatpush1.bf16.msra.mxu0 0
        %889 = vmatprep.subr.bf16.mxu0 0
        %890 = vmatpush1.bf16.msra.mxu0 0
        %891 = vmatprep.subr.bf16.mxu0 0
        %892 = vmatpush1.bf16.msra.mxu0 0
        %893 = vmatprep.subr.bf16.mxu0 0
        %894 = vmatpush1.bf16.msra.mxu0 0
        %895 = vmatprep.subr.bf16.mxu0 0
        %896 = vmatpush1.bf16.msra.mxu0 0
        %897 = vmatprep.subr.bf16.mxu0 0
        %898 = vmatpush1.bf16.msra.mxu0 0
        %899 = vmatprep.subr.bf16.mxu0 0
        %900 = vmatpush1.bf16.msra.mxu0 0
        %901 = vmatprep.mubr.bf16.mxu0 0
        %902 = vmatmul.mubr.bf16.gmra.mrb[0].mxu0 %v797
        %v903 = vpop.f32.mrb[0].mxu0
        %v904 = vadd.f32 %v819, %v903
        %v905 = vpop.f32.mrb[0].mxu0
        %v906 = vpop.f32.mrb[0].mxu0
        %v907 = vpop.f32.mrb[0].mxu0
        %908 = vdwg.mxu0
        %s909 = sld [smem:[#allocation2 + $0x2]]
        %vm910 = vcmp.ge.f32.partialorder %v904, 0.0
        %v911 = vstv %s909
        %v912 = vmul.f32 %v911, %v904
        %v913 = vsel %vm910, %v904, %v912
        %v914 = vpack.c.bf16 %v913, %v913
        %v915 = vld [vmem:[#allocation7] sm:$0xf]
        %v916 = vld [vmem:[#allocation7 + $0x4] sm:$0xf]
        %v917 = vld [vmem:[#allocation7 + $0x8] sm:$0xf]
        %v918 = vld [vmem:[#allocation7 + $0xc] sm:$0xf]
        %v919 = vld [vmem:[#allocation7 + $0x10] sm:$0xf]
        %v920 = vld [vmem:[#allocation7 + $0x14] sm:$0xf]
        %v921 = vld [vmem:[#allocation7 + $0x18] sm:$0xf]
        %v922 = vld [vmem:[#allocation7 + $0x1c] sm:$0xf]
        %v923 = vld [vmem:[%s9] sm:$0x1]
        %v925 = vlaneseq
        %v926 = vshrl.u32 %v925, 7
        %v927 = vsub.s32 0, %v926
        %v928 = vrot.slane %v923, %v927
        %v938 = vunpack.c.l.b16 %v915
        %v939 = vunpack.c.l.b16 %v916
        %v940 = vunpack.c.l.b16 %v917
        %v941 = vunpack.c.l.b16 %v918
        %v942 = vunpack.c.l.b16 %v919
        %v943 = vunpack.c.l.b16 %v920
        %v944 = vunpack.c.l.b16 %v921
        %v945 = vunpack.c.l.b16 %v922
        %v946 = vpack.c.b16 %v939, %v938
        %v947 = vpack.c.b16 %v941, %v940
        %v948 = vpack.c.b16 %v943, %v942
        %v949 = vpack.c.b16 %v945, %v944
        %vm954 = vcmask 523264
        %v956 = vsel %vm954, %v914, 0
        %958 = vmatprep.subr.bf16.mxu0 0
        %959 = vmatpush1.bf16.msra.mxu0 %v946
        %960 = vmatprep.subr.bf16.mxu0 0
        %961 = vmatpush1.bf16.msra.mxu0 %v947
        %962 = vmatprep.subr.bf16.mxu0 0
        %963 = vmatpush1.bf16.msra.mxu0 %v948
        %964 = vmatprep.subr.bf16.mxu0 0
        %965 = vmatpush1.bf16.msra.mxu0 %v949
        %966 = vmatprep.subr.bf16.mxu0 0
        %967 = vmatpush1.bf16.msra.mxu0 0
        %968 = vmatprep.subr.bf16.mxu0 0
        %969 = vmatpush1.bf16.msra.mxu0 0
        %970 = vmatprep.subr.bf16.mxu0 0
        %971 = vmatpush1.bf16.msra.mxu0 0
        %972 = vmatprep.subr.bf16.mxu0 0
        %973 = vmatpush1.bf16.msra.mxu0 0
        %974 = vmatprep.subr.bf16.mxu0 0
        %975 = vmatpush1.bf16.msra.mxu0 0
        %976 = vmatprep.subr.bf16.mxu0 0
        %977 = vmatpush1.bf16.msra.mxu0 0
        %978 = vmatprep.subr.bf16.mxu0 0
        %979 = vmatpush1.bf16.msra.mxu0 0
        %980 = vmatprep.subr.bf16.mxu0 0
        %981 = vmatpush1.bf16.msra.mxu0 0
        %982 = vmatprep.subr.bf16.mxu0 0
        %983 = vmatpush1.bf16.msra.mxu0 0
        %984 = vmatprep.subr.bf16.mxu0 0
        %985 = vmatpush1.bf16.msra.mxu0 0
        %986 = vmatprep.subr.bf16.mxu0 0
        %987 = vmatpush1.bf16.msra.mxu0 0
        %988 = vmatprep.subr.bf16.mxu0 0
        %989 = vmatpush1.bf16.msra.mxu0 0
        %990 = vmatprep.mubr.bf16.mxu0 0
        %991 = vmatmul.mubr.bf16.gmra.mrb[0].mxu0 %v956
        %v992 = vpop.f32.mrb[0].mxu0
        %v993 = vadd.f32 %v928, %v992
        %v994 = vpop.f32.mrb[0].mxu0
        %v995 = vpop.f32.mrb[0].mxu0
        %v996 = vpop.f32.mrb[0].mxu0
        %997 = vdwg.mxu0
        %s998 = sld [smem:[#allocation2 + $0x3]]
        %vm999 = vcmp.ge.f32.partialorder %v993, 0.0
        %v1000 = vstv %s998
        %v1001 = vmul.f32 %v1000, %v993
        %v1002 = vsel %vm999, %v993, %v1001
        %v1003 = vpack.c.bf16 %v1002, %v1002
        %v1004 = vld [vmem:[#allocation9] sm:$0xff]
        %v1005 = vld [vmem:[#allocation9 + $0x8] sm:$0xff]
        %v1006 = vld [vmem:[#allocation9 + $0x10] sm:$0xff]
        %v1007 = vld [vmem:[#allocation9 + $0x18] sm:$0xff]
        %v1008 = vld [vmem:[#allocation9 + $0x20] sm:$0xff]
        %v1009 = vld [vmem:[#allocation9 + $0x28] sm:$0xff]
        %v1010 = vld [vmem:[#allocation9 + $0x30] sm:$0xff]
        %v1011 = vld [vmem:[#allocation9 + $0x38] sm:$0xff]
        %v1012 = vld [vmem:[#allocation9 + $0x40] sm:$0xff]
        %v1013 = vld [vmem:[#allocation9 + $0x48] sm:$0xff]
        %v1014 = vld [vmem:[#allocation9 + $0x50] sm:$0xff]
        %v1015 = vld [vmem:[#allocation9 + $0x58] sm:$0xff]
        %v1016 = vld [vmem:[#allocation9 + $0x60] sm:$0xff]
        %v1017 = vld [vmem:[#allocation9 + $0x68] sm:$0xff]
        %v1018 = vld [vmem:[#allocation9 + $0x70] sm:$0xff]
        %v1019 = vld [vmem:[#allocation9 + $0x78] sm:$0xff]
        %v1020 = vld [vmem:[%s11] sm:$0x3]
        %v1022 = vlaneseq
        %v1023 = vshrl.u32 %v1022, 7
        %v1024 = vsub.s32 0, %v1023
        %v1025 = vrot.slane %v1020, %v1024
        %v1026 = vlaneseq
        %v1027 = vshrl.u32 %v1026, 7
        %v1028 = vsub.s32 1, %v1027
        %v1029 = vrot.slane %v1020, %v1028
        %v1048 = vunpack.c.l.b16 %v1004
        %v1049 = vunpack.c.h.b16 %v1004
        %v1050 = vunpack.c.l.b16 %v1005
        %v1051 = vunpack.c.h.b16 %v1005
        %v1052 = vunpack.c.l.b16 %v1006
        %v1053 = vunpack.c.h.b16 %v1006
        %v1054 = vunpack.c.l.b16 %v1007
        %v1055 = vunpack.c.h.b16 %v1007
        %v1056 = vunpack.c.l.b16 %v1008
        %v1057 = vunpack.c.h.b16 %v1008
        %v1058 = vunpack.c.l.b16 %v1009
        %v1059 = vunpack.c.h.b16 %v1009
        %v1060 = vunpack.c.l.b16 %v1010
        %v1061 = vunpack.c.h.b16 %v1010
        %v1062 = vunpack.c.l.b16 %v1011
        %v1063 = vunpack.c.h.b16 %v1011
        %v1064 = vunpack.c.l.b16 %v1012
        %v1065 = vunpack.c.h.b16 %v1012
        %v1066 = vunpack.c.l.b16 %v1013
        %v1067 = vunpack.c.h.b16 %v1013
        %v1068 = vunpack.c.l.b16 %v1014
        %v1069 = vunpack.c.h.b16 %v1014
        %v1070 = vunpack.c.l.b16 %v1015
        %v1071 = vunpack.c.h.b16 %v1015
        %v1072 = vunpack.c.l.b16 %v1016
        %v1073 = vunpack.c.h.b16 %v1016
        %v1074 = vunpack.c.l.b16 %v1017
        %v1075 = vunpack.c.h.b16 %v1017
        %v1076 = vunpack.c.l.b16 %v1018
        %v1077 = vunpack.c.h.b16 %v1018
        %v1078 = vunpack.c.l.b16 %v1019
        %v1079 = vunpack.c.h.b16 %v1019
        %v1080 = vpack.c.b16 %v1050, %v1048
        %v1081 = vpack.c.b16 %v1051, %v1049
        %v1082 = vpack.c.b16 %v1054, %v1052
        %v1083 = vpack.c.b16 %v1055, %v1053
        %v1084 = vpack.c.b16 %v1058, %v1056
        %v1085 = vpack.c.b16 %v1059, %v1057
        %v1086 = vpack.c.b16 %v1062, %v1060
        %v1087 = vpack.c.b16 %v1063, %v1061
        %v1088 = vpack.c.b16 %v1066, %v1064
        %v1089 = vpack.c.b16 %v1067, %v1065
        %v1090 = vpack.c.b16 %v1070, %v1068
        %v1091 = vpack.c.b16 %v1071, %v1069
        %v1092 = vpack.c.b16 %v1074, %v1072
        %v1093 = vpack.c.b16 %v1075, %v1073
        %v1094 = vpack.c.b16 %v1078, %v1076
        %v1095 = vpack.c.b16 %v1079, %v1077
        %1112 = vmatprep.subr.bf16.mxu0 %v1081
        %1113 = vmatpush1.bf16.msra.mxu0 %v1080
        %1114 = vmatprep.subr.bf16.mxu0 %v1083
        %1115 = vmatpush1.bf16.msra.mxu0 %v1082
        %1116 = vmatprep.subr.bf16.mxu0 %v1085
        %1117 = vmatpush1.bf16.msra.mxu0 %v1084
        %1118 = vmatprep.subr.bf16.mxu0 %v1087
        %1119 = vmatpush1.bf16.msra.mxu0 %v1086
        %1120 = vmatprep.subr.bf16.mxu0 %v1089
        %1121 = vmatpush1.bf16.msra.mxu0 %v1088
        %1122 = vmatprep.subr.bf16.mxu0 %v1091
        %1123 = vmatpush1.bf16.msra.mxu0 %v1090
        %1124 = vmatprep.subr.bf16.mxu0 %v1093
        %1125 = vmatpush1.bf16.msra.mxu0 %v1092
        %1126 = vmatprep.subr.bf16.mxu0 %v1095
        %1127 = vmatpush1.bf16.msra.mxu0 %v1094
        %1128 = vmatprep.subr.bf16.mxu0 0
        %1129 = vmatpush1.bf16.msra.mxu0 0
        %1130 = vmatprep.subr.bf16.mxu0 0
        %1131 = vmatpush1.bf16.msra.mxu0 0
        %1132 = vmatprep.subr.bf16.mxu0 0
        %1133 = vmatpush1.bf16.msra.mxu0 0
        %1134 = vmatprep.subr.bf16.mxu0 0
        %1135 = vmatpush1.bf16.msra.mxu0 0
        %1136 = vmatprep.subr.bf16.mxu0 0
        %1137 = vmatpush1.bf16.msra.mxu0 0
        %1138 = vmatprep.subr.bf16.mxu0 0
        %1139 = vmatpush1.bf16.msra.mxu0 0
        %1140 = vmatprep.subr.bf16.mxu0 0
        %1141 = vmatpush1.bf16.msra.mxu0 0
        %1142 = vmatprep.subr.bf16.mxu0 0
        %1143 = vmatpush1.bf16.msra.mxu0 0
        %1144 = vmatprep.mubr.bf16.mxu0 0
        %1145 = vmatmul.mubr.bf16.gmra.mrb[0].mxu0 %v1003
        %v1146 = vpop.f32.mrb[0].mxu0
        %v1147 = vadd.f32 %v1025, %v1146
        %v1148 = vpop.f32.mrb[0].mxu0
        %v1149 = vadd.f32 %v1029, %v1148
        %v1150 = vpop.f32.mrb[0].mxu0
        %v1151 = vpop.f32.mrb[0].mxu0
        %1152 = vdwg.mxu0
        %s1153 = sld [smem:[#allocation2 + $0x4]]
        %vm1154 = vcmp.ge.f32.partialorder %v1147, 0.0
        %vm1155 = vcmp.ge.f32.partialorder %v1149, 0.0
        %v1156 = vstv %s1153
        %v1157 = vmul.f32 %v1156, %v1147
        %v1158 = vmul.f32 %v1156, %v1149
        %v1159 = vsel %vm1154, %v1147, %v1157
        %v1160 = vsel %vm1155, %v1149, %v1158
        %v1161 = vpack.c.bf16 %v1159, %v1159
        %v1162 = vpack.c.bf16 %v1160, %v1160
        %v1163 = vld [vmem:[#allocation10] sm:$0xf]
        %v1164 = vld [vmem:[#allocation10 + $0x4] sm:$0xf]
        %v1165 = vld [vmem:[#allocation10 + $0x8] sm:$0xf]
        %v1166 = vld [vmem:[#allocation10 + $0xc] sm:$0xf]
        %v1167 = vld [vmem:[#allocation10 + $0x10] sm:$0xf]
        %v1168 = vld [vmem:[#allocation10 + $0x14] sm:$0xf]
        %v1169 = vld [vmem:[#allocation10 + $0x18] sm:$0xf]
        %v1170 = vld [vmem:[#allocation10 + $0x1c] sm:$0xf]
        %v1171 = vld [vmem:[#allocation10 + $0x20] sm:$0xf]
        %v1172 = vld [vmem:[#allocation10 + $0x24] sm:$0xf]
        %v1173 = vld [vmem:[#allocation10 + $0x28] sm:$0xf]
        %v1174 = vld [vmem:[#allocation10 + $0x2c] sm:$0xf]
        %v1175 = vld [vmem:[#allocation10 + $0x30] sm:$0xf]
        %v1176 = vld [vmem:[#allocation10 + $0x34] sm:$0xf]
        %v1177 = vld [vmem:[#allocation10 + $0x38] sm:$0xf]
        %v1178 = vld [vmem:[#allocation10 + $0x3c] sm:$0xf]
        %v1179 = vld [vmem:[#allocation10 + $0x40] sm:$0xf]
        %v1180 = vld [vmem:[#allocation10 + $0x44] sm:$0xf]
        %v1181 = vld [vmem:[#allocation10 + $0x48] sm:$0xf]
        %v1182 = vld [vmem:[#allocation10 + $0x4c] sm:$0xf]
        %v1183 = vld [vmem:[#allocation10 + $0x50] sm:$0xf]
        %v1184 = vld [vmem:[#allocation10 + $0x54] sm:$0xf]
        %v1185 = vld [vmem:[#allocation10 + $0x58] sm:$0xf]
        %v1186 = vld [vmem:[#allocation10 + $0x5c] sm:$0xf]
        %v1187 = vld [vmem:[#allocation10 + $0x60] sm:$0xf]
        %v1188 = vld [vmem:[#allocation10 + $0x64] sm:$0xf]
        %v1189 = vld [vmem:[#allocation10 + $0x68] sm:$0xf]
        %v1190 = vld [vmem:[#allocation10 + $0x6c] sm:$0xf]
        %v1191 = vld [vmem:[#allocation10 + $0x70] sm:$0xf]
        %v1192 = vld [vmem:[#allocation10 + $0x74] sm:$0xf]
        %v1193 = vld [vmem:[#allocation10 + $0x78] sm:$0xf]
        %v1194 = vld [vmem:[#allocation10 + $0x7c] sm:$0xf]
        %v1195 = vld [vmem:[%s13] sm:$0x1]
        %v1197 = vlaneseq
        %v1198 = vshrl.u32 %v1197, 7
        %v1199 = vsub.s32 0, %v1198
        %v1200 = vrot.slane %v1195, %v1199
        %v1234 = vunpack.c.l.b16 %v1163
        %v1235 = vunpack.c.l.b16 %v1164
        %v1236 = vunpack.c.l.b16 %v1165
        %v1237 = vunpack.c.l.b16 %v1166
        %v1238 = vunpack.c.l.b16 %v1167
        %v1239 = vunpack.c.l.b16 %v1168
        %v1240 = vunpack.c.l.b16 %v1169
        %v1241 = vunpack.c.l.b16 %v1170
        %v1242 = vunpack.c.l.b16 %v1171
        %v1243 = vunpack.c.l.b16 %v1172
        %v1244 = vunpack.c.l.b16 %v1173
        %v1245 = vunpack.c.l.b16 %v1174
        %v1246 = vunpack.c.l.b16 %v1175
        %v1247 = vunpack.c.l.b16 %v1176
        %v1248 = vunpack.c.l.b16 %v1177
        %v1249 = vunpack.c.l.b16 %v1178
        %v1250 = vunpack.c.l.b16 %v1179
        %v1251 = vunpack.c.l.b16 %v1180
        %v1252 = vunpack.c.l.b16 %v1181
        %v1253 = vunpack.c.l.b16 %v1182
        %v1254 = vunpack.c.l.b16 %v1183
        %v1255 = vunpack.c.l.b16 %v1184
        %v1256 = vunpack.c.l.b16 %v1185
        %v1257 = vunpack.c.l.b16 %v1186
        %v1258 = vunpack.c.l.b16 %v1187
        %v1259 = vunpack.c.l.b16 %v1188
        %v1260 = vunpack.c.l.b16 %v1189
        %v1261 = vunpack.c.l.b16 %v1190
        %v1262 = vunpack.c.l.b16 %v1191
        %v1263 = vunpack.c.l.b16 %v1192
        %v1264 = vunpack.c.l.b16 %v1193
        %v1265 = vunpack.c.l.b16 %v1194
        %v1266 = vpack.c.b16 %v1235, %v1234
        %v1267 = vpack.c.b16 %v1237, %v1236
        %v1268 = vpack.c.b16 %v1239, %v1238
        %v1269 = vpack.c.b16 %v1241, %v1240
        %v1270 = vpack.c.b16 %v1243, %v1242
        %v1271 = vpack.c.b16 %v1245, %v1244
        %v1272 = vpack.c.b16 %v1247, %v1246
        %v1273 = vpack.c.b16 %v1249, %v1248
        %v1274 = vpack.c.b16 %v1251, %v1250
        %v1275 = vpack.c.b16 %v1253, %v1252
        %v1276 = vpack.c.b16 %v1255, %v1254
        %v1277 = vpack.c.b16 %v1257, %v1256
        %v1278 = vpack.c.b16 %v1259, %v1258
        %v1279 = vpack.c.b16 %v1261, %v1260
        %v1280 = vpack.c.b16 %v1263, %v1262
        %v1281 = vpack.c.b16 %v1265, %v1264
        %1298 = vmatprep.subr.bf16.mxu0 0
        %1299 = vmatpush1.bf16.msra.mxu0 %v1266
        %1300 = vmatprep.subr.bf16.mxu0 0
        %1301 = vmatpush1.bf16.msra.mxu0 %v1267
        %1302 = vmatprep.subr.bf16.mxu0 0
        %1303 = vmatpush1.bf16.msra.mxu0 %v1268
        %1304 = vmatprep.subr.bf16.mxu0 0
        %1305 = vmatpush1.bf16.msra.mxu0 %v1269
        %1306 = vmatprep.subr.bf16.mxu0 0
        %1307 = vmatpush1.bf16.msra.mxu0 %v1270
        %1308 = vmatprep.subr.bf16.mxu0 0
        %1309 = vmatpush1.bf16.msra.mxu0 %v1271
        %1310 = vmatprep.subr.bf16.mxu0 0
        %1311 = vmatpush1.bf16.msra.mxu0 %v1272
        %1312 = vmatprep.subr.bf16.mxu0 0
        %1313 = vmatpush1.bf16.msra.mxu0 %v1273
        %1314 = vmatprep.subr.bf16.mxu0 0
        %1315 = vmatpush1.bf16.msra.mxu0 %v1274
        %1316 = vmatprep.subr.bf16.mxu0 0
        %1317 = vmatpush1.bf16.msra.mxu0 %v1275
        %1318 = vmatprep.subr.bf16.mxu0 0
        %1319 = vmatpush1.bf16.msra.mxu0 %v1276
        %1320 = vmatprep.subr.bf16.mxu0 0
        %1321 = vmatpush1.bf16.msra.mxu0 %v1277
        %1322 = vmatprep.subr.bf16.mxu0 0
        %1323 = vmatpush1.bf16.msra.mxu0 %v1278
        %1324 = vmatprep.subr.bf16.mxu0 0
        %1325 = vmatpush1.bf16.msra.mxu0 %v1279
        %1326 = vmatprep.subr.bf16.mxu0 0
        %1327 = vmatpush1.bf16.msra.mxu0 %v1280
        %1328 = vmatprep.subr.bf16.mxu0 0
        %1329 = vmatpush1.bf16.msra.mxu0 %v1281
        %1330 = vmatprep.mubr.bf16.mxu0 %v1162
        %1331 = vmatmul.mubr.bf16.gmra.mrb[0].mxu0 %v1161
        %v1332 = vpop.f32.mrb[0].mxu0
        %v1333 = vadd.f32 %v1200, %v1332
        %v1334 = vpop.f32.mrb[0].mxu0
        %v1335 = vpop.f32.mrb[0].mxu0
        %v1336 = vpop.f32.mrb[0].mxu0
        %1337 = vdwg.mxu0
        %1338 = vst [vmem:[%s529] sm:$0xff] %v1333
        %s1339 = sand.u32 %s339, 1
        %s1340 = scalar_lea.sflag [#allocation4], %s1339
        %s1341 = sand.u32 %s339, 1
        %s1342 = smul.addr %s1341, 8
        %s1343 = scalar_lea.vmem [#allocation12], %s1342
        // Predicated region
        $region97: #{tpu_custom_call.1} parent=75 // pred_check
          %p1344 = pneg %p349
        $region98: #{tpu_custom_call.1} parent=75 // pred_check_branch
          %1346 = sbr.rel (%p1344) target = $region100
        $region99: #{tpu_custom_call.1} parent=75 // pred_region
          %s1348 = ssub.s32 128, 128
          %1349 = vsyncadd %s1340, %s1348
          %s1350 = smul.addr %s32, 128
          %s1351 = scalar_lea.hbm %s14, %s1350
          %s1353 = sshll.u32 %s1343, 4
          %s1354 = int_to_ptr.vmem [resolvable:$true] %s1353
          %1356 = dma.vmem_to_hbm [thread:$0]  %s1354, 128, %s1351, %s1340
        $region100: #{tpu_custom_call.1} parent=75 // pred_fallthru
          _
      $region76: #{tpu_custom_call.1} parent=5 // pred_fallthru
        _
      %p1357 = scmp.le.s32.totalorder 2, %s27
      // Predicated region
      $region101: #{tpu_custom_call.1} parent=5 // pred_check
        %p1358 = pneg %p1357
      $region102: #{tpu_custom_call.1} parent=5 // pred_check_branch
        %1360 = sbr.rel (%p1358) target = $region104
      $region103: #{tpu_custom_call.1} parent=5 // pred_region
        %s1361 = ssub.s32 %s27, 2
        // Predicated region
        $region105: #{tpu_custom_call.1} parent=103 // pred_check
          %p1362 = pneg %p355
        $region106: #{tpu_custom_call.1} parent=103 // pred_check_branch
          %1364 = sbr.rel (%p1362) target = $region108
        $region107: #{tpu_custom_call.1} parent=103 // pred_region
          %s1365 = sand.u32 %s340, 1
          %s1366 = scalar_lea.sflag [#allocation4], %s1365
          %s1367 = sand.u32 %s340, 1
          %s1368 = smul.addr %s1367, 8
          %s1369 = scalar_lea.vmem [#allocation12], %s1368
          %1370 = dma.done %s1366, 128
        $region108: #{tpu_custom_call.1} parent=103 // pred_fallthru
          _
      $region104: #{tpu_custom_call.1} parent=5 // pred_fallthru
        _
    $region6: #{tpu_custom_call.1} parent=1 // loop_footer
      %s31 = sadd.s32 1, %s27
    $region7: #{tpu_custom_call.1} parent=1 // loop_footer_branch
      %26 = sbr.rel target = $region3
    $region8: #{tpu_custom_call.1} parent=1 // loop_exit
      _
    %1371 = vsyncpa [#allocation3], 1
    %s1372 = scalar_lea.sflag [#allocation3], 1
    %1373 = vsyncpa %s1372, 1
    %1374 = vsyncpa [#allocation8], 1
    %1375 = vsyncpa [#allocation11], 1
    %1376 = vsyncpa [#allocation4], 1
    %s1377 = scalar_lea.sflag [#allocation4], 1
    %1378 = vsyncpa %s1377, 1
    %1379 = vsyncpa [#allocation5], 1
    %s1380 = scalar_lea.sflag [#allocation5], 1
    %1381 = vsyncpa %s1380, 1

</llo_original>
